<compile_context>
chip_gen: v5e
topology: v5e:2x2
jax: 0.10.0
libtpu: 0.0.40
codegen_flags: <defaults>
</compile_context>

<pallas_src>
import jax
import jax.numpy as jnp
from jax.experimental import pallas as pl
from jax.experimental.pallas import tpu as pltpu


def _round_up(a, b):
    return (a + b - 1) // b * b


def _pointwise_conv_sigmoid_kernel(x_ref, w_ref, b_ref, o_ref):
    # x_ref: (Cin, TM)   activation tile, spatial in the lane dim
    # w_ref: (Cout, Cin) 1x1x1 conv weight (constant block -> DMA'd once)
    # b_ref: (Cout, 1)   bias column (f32)
    # o_ref: (Cout, TM)  lane-dense output tile
    acc = jnp.dot(w_ref[...], x_ref[...],
                  preferred_element_type=jnp.float32)        # MXU, f32 accum
    acc = acc + b_ref[...]                                   # f32 epilogue
    o_ref[...] = jax.nn.sigmoid(acc).astype(o_ref.dtype)     # EUP exp/recip


def output_transition_forward(x_ncdhw, params, *, tile_vmem_budget=24 << 20):
    """sigmoid(1x1x1 Conv3d(x)): fused matmul + bias + sigmoid in Pallas."""
    n, cin, d, h, w = x_ncdhw.shape
    wt = params["w"]                        # (Cout, Cin, 1, 1, 1) PyTorch layout
    b = params["b"]                         # (Cout,)
    cout = wt.shape[0]

    m = d * h * w
    elt = jnp.dtype(x_ncdhw.dtype).itemsize

    # --- Spatial tile: as large as the double-buffered VMEM budget allows,
    #     but never larger than the (128-rounded) per-image volume.
    per_col = 2 * (cin + cout) * elt          # input+output, 2 pipeline buffers
    tm_cap = max((tile_vmem_budget // per_col) // 128 * 128, 128)
    tm = min(_round_up(m, 128), tm_cap)
    # Keep >=2 independent "parallel" grid steps so both v7x TCs get work.
    if n == 1 and tm >= m and m > 256:
        tm = max(_round_up(pl.cdiv(m, 2), 128), 128)

    num_tiles = pl.cdiv(m, tm)                # ragged last block is fine:
    grid = (n, num_tiles)                     # no spatial reduction anywhere.

    x_flat = x_ncdhw.reshape(n, cin, m)       # pure view: NCDHW -> (N, Cin, M)
    w2d = wt.reshape(cout, cin).astype(x_flat.dtype)          # (Cout, Cin)
    b2d = b.reshape(cout, 1).astype(jnp.float32)              # (Cout, 1)

    cost = pl.CostEstimate(
        flops=2 * n * m * cin * cout,
        transcendentals=n * m * cout,
        bytes_accessed=(n * m * (cin + cout) + cin * cout + cout) * elt,
    )
    # Double-buffered input/output tiles + resident weight/bias + slack.
    # Clamp to [8 MiB, 48 MiB]: never request all of v7x's 64 MiB VMEM.
    vmem_limit = int(min(
        max(per_col * tm + (cin * cout + cout) * 4 + (4 << 20), 8 << 20),
        48 << 20))

    out_flat = pl.pallas_call(
        _pointwise_conv_sigmoid_kernel,
        out_shape=jax.ShapeDtypeStruct((n, cout, m), x_ncdhw.dtype),
        grid=grid,
        in_specs=[
            pl.BlockSpec((None, cin, tm), lambda i, j: (i, 0, j)),   # x tile
            pl.BlockSpec((cout, cin), lambda i, j: (0, 0)),          # weight
            pl.BlockSpec((cout, 1), lambda i, j: (0, 0)),            # bias
        ],
        out_specs=pl.BlockSpec((None, cout, tm), lambda i, j: (i, 0, j)),
        compiler_params=pltpu.CompilerParams(
            dimension_semantics=("parallel", "parallel"),
            vmem_limit_bytes=vmem_limit),
        cost_estimate=cost,
    )(x_flat, w2d, b2d)

    return out_flat.reshape(n, cout, d, h, w)                 # back to NCDHW


if __name__ == "__main__":
    key = jax.random.PRNGKey(0)
    kx, kw, kb = jax.random.split(key, 3)
    N, CIN, D, H, W = 2, 32, 16, 16, 16      # inChans = 32
    NLABELS = 8                              # n_labels = 8
    x = jax.random.normal(kx, (N, CIN, D, H, W), dtype=jnp.float32)
    params = {
        "w": 0.1 * jax.random.normal(kw, (NLABELS, CIN, 1, 1, 1),
                                     dtype=jnp.float32),
        "b": 0.1 * jax.random.normal(kb, (NLABELS,), dtype=jnp.float32),
    }

    out = jax.jit(output_transition_forward)(x, params)
    out = jax.block_until_ready(out)

    # Pure-JAX reference of the same forward pass.
    w2d = params["w"].reshape(NLABELS, CIN)
    ref = jax.nn.sigmoid(
        jnp.einsum("oc,ncdhw->nodhw", w2d, x)
        + params["b"][None, :, None, None, None])

    assert out.shape == (N, NLABELS, D, H, W), out.shape
    assert jnp.allclose(out, ref, atol=5e-3, rtol=1e-3)
    assert bool(jnp.all((out >= 0.0) & (out <= 1.0)))   # sigmoid range
    print("KERNEL_OK")
</pallas_src>

<mosaic_0001>
module attributes {stable_mosaic.version = 11 : i64} {
  func.func @_pointwise_conv_sigmoid_kernel(%arg0: i32, %arg1: i32, %arg2: memref<1x32x4096xf32, #tpu.memory_space<vmem>>, %arg3: memref<8x32xf32, #tpu.memory_space<vmem>>, %arg4: memref<8x1xf32, #tpu.memory_space<vmem>>, %arg5: memref<1x8x4096xf32, #tpu.memory_space<vmem>>) attributes {dimension_semantics = [#tpu.dimension_semantics<parallel>, #tpu.dimension_semantics<parallel>], iteration_bounds = array<i64: 2, 1>, scalar_prefetch = 0 : i64, scratch_operands = 0 : i64, tpu.core_type = #tpu.core_type<tc>, window_params = [{transform_indices = @transform_0, window_bounds = array<i64: 1, 32, 4096>}, {pipeline_mode = #tpu.pipeline_mode<synchronous>, transform_indices = @transform_1, window_bounds = array<i64: 8, 32>}, {pipeline_mode = #tpu.pipeline_mode<synchronous>, transform_indices = @transform_2, window_bounds = array<i64: 8, 1>}, {transform_indices = @transform_3, window_bounds = array<i64: 1, 8, 4096>}]} {
    %c0 = arith.constant 0 : index
    %c0_0 = arith.constant 0 : index
    %0 = vector.load %arg3[%c0, %c0_0] : memref<8x32xf32, #tpu.memory_space<vmem>>, vector<8x32xf32>
    %c0_1 = arith.constant 0 : index
    %c0_2 = arith.constant 0 : index
    %c0_3 = arith.constant 0 : index
    %1 = vector.load %arg2[%c0_1, %c0_2, %c0_3] : memref<1x32x4096xf32, #tpu.memory_space<vmem>>, vector<1x32x4096xf32>
    %2 = vector.shape_cast %1 : vector<1x32x4096xf32> to vector<32x4096xf32>
    %cst = arith.constant dense<0.000000e+00> : vector<8x4096xf32>
    %3 = tpu.matmul %0, %2, %cst {dimension_numbers = #tpu.dot_dimension_numbers<[1], [0], [0], [1], [0, 0, 1, 1], [], []>} : vector<8x32xf32>, vector<32x4096xf32>, vector<8x4096xf32> -> vector<8x4096xf32>
    %c0_4 = arith.constant 0 : index
    %c0_5 = arith.constant 0 : index
    %4 = vector.load %arg4[%c0_4, %c0_5] : memref<8x1xf32, #tpu.memory_space<vmem>>, vector<8x1xf32>
    %5 = vector.broadcast %4 : vector<8x1xf32> to vector<8x4096xf32>
    %6 = arith.addf %3, %5 : vector<8x4096xf32>
    %7 = arith.negf %6 : vector<8x4096xf32>
    %8 = math.exp %7 : vector<8x4096xf32>
    %cst_6 = arith.constant 1.000000e+00 : f32
    %9 = vector.broadcast %cst_6 : f32 to vector<8x4096xf32>
    %10 = arith.addf %9, %8 : vector<8x4096xf32>
    %11 = arith.divf %9, %10 : vector<8x4096xf32>
    %c0_7 = arith.constant 0 : index
    %c0_8 = arith.constant 0 : index
    %c0_9 = arith.constant 0 : index
    %12 = vector.load %arg5[%c0_7, %c0_8, %c0_9] : memref<1x8x4096xf32, #tpu.memory_space<vmem>>, vector<1x8x4096xf32>
    %13 = vector.shape_cast %12 : vector<1x8x4096xf32> to vector<8x4096xf32>
    %14 = vector.shape_cast %11 : vector<8x4096xf32> to vector<1x8x4096xf32>
    tpu.vector_store %arg5[%c0_7, %c0_8, %c0_9], %14 {strides = array<i32>} : memref<1x8x4096xf32, #tpu.memory_space<vmem>>, vector<1x8x4096xf32>,
    return
  }
  func.func @transform_0(%arg0: i32, %arg1: i32) -> (i32, i32, i32) {
    %c0_i32 = arith.constant 0 : i32
    %c0_i32_0 = arith.constant 0 : i32
    return %arg0, %c0_i32, %arg1 : i32, i32, i32
  }
  func.func @transform_1(%arg0: i32, %arg1: i32) -> (i32, i32) {
    %c0_i32 = arith.constant 0 : i32
    %c0_i32_0 = arith.constant 0 : i32
    %c0_i32_1 = arith.constant 0 : i32
    return %c0_i32, %c0_i32_0 : i32, i32
  }
  func.func @transform_2(%arg0: i32, %arg1: i32) -> (i32, i32) {
    %c0_i32 = arith.constant 0 : i32
    %c0_i32_0 = arith.constant 0 : i32
    %c0_i32_1 = arith.constant 0 : i32
    return %c0_i32, %c0_i32_0 : i32, i32
  }
  func.func @transform_3(%arg0: i32, %arg1: i32) -> (i32, i32, i32) {
    %c0_i32 = arith.constant 0 : i32
    %c0_i32_0 = arith.constant 0 : i32
    return %arg0, %c0_i32, %arg1 : i32, i32, i32
  }
}

</mosaic_0001>

<llo_original>
// kernel: output_transition_forward.1
$region0: #{output_transition_forward.1}
  #allocation0 [shape = 'u32[]', space=smem, size = 0x4, offset = 0x4, fixed_abs, tag = 'smem constant byte address 0x4 - core index']
  #allocation1 [shape = 'u32[72,128]{1,0:T(1,128)}', space=vmem, size = 0x9000, scoped, tag = 'internal scratch']
  %s0 = inlined_call_operand.vmem [shape: f32[2,32,4096], index: 0, kind: input, shape index: {}]
  %s1 = inlined_call_operand.vmem [shape: f32[8,32], index: 1, kind: input, shape index: {}]
  %s2 = inlined_call_operand.vmem [shape: f32[8,1], index: 2, kind: input, shape index: {}]
  %s3 = inlined_call_operand.vmem [shape: f32[2,8,4096], index: 3, kind: output, shape index: {}]
  %s4 = sld [smem:[#allocation0]]
  $region45: #{output_transition_forward.1} parent=0
    _
  %s6 = ssub.s32 1, %s4
  %s7 = scalar_select 0, %s6, %s4
  loop: start=0, step=1, limit=4
  $region2: #{output_transition_forward.1} parent=0 // loop_pre_header
    _
  $region3: #{output_transition_forward.1} parent=0 // loop_header
    %s9 = sphi 0, %s13
    %p10 = scmp.ge.s32.totalorder %s9, 4
    %s16 = sphi 0, %s28
    %s17 = sphi 0, %s24
    %s18 = sphi 0, %s16
    %s19 = sphi 0, %s17
    %s20 = sphi 0, %s18
    %s21 = sphi 0, %s19
    %s33 = sphi 0, %s35
    %s36 = sphi 0, %s33
    %s37 = sphi 0, %s36
    %s53 = sphi 0, %s37
    %s57 = sphi 0, %s57
    %s59 = sphi 0, %s57
    %s60 = sphi 0, %s59
    %s74 = sphi 0, %s60
    %s78 = sphi 0, %s78
    %s80 = sphi 0, %s78
    %s81 = sphi 0, %s80
    %s95 = sphi 0, %s81
    %s103 = sphi 0, %s105
    %s106 = sphi 0, %s103
    %s107 = sphi 0, %s106
    %s123 = sphi 0, %s107
  $region4: #{output_transition_forward.1} parent=0 // loop_header_branch
    %12 = sbr.rel (%p10) target = $region8
  $region5: #{output_transition_forward.1} parent=0 // loop_body
    %s14 = ssub.s32 %s9, 1
    %s15 = ssub.s32 %s9, 2
    %s22 = sadd.s32 1, %s17
    %p23 = scmp.ge.s32.totalorder %s22, 1
    %s24 = scalar_select %p23, 0, %s22
    %s25 = sadd.s32 1, %s16
    %s26 = scalar_select %p23, %s25, %s16
    %p27 = scmp.ge.s32.totalorder %s26, 2
    %s28 = scalar_select %p27, 0, %s26
    %s29 = ssub.s32 %s16, %s28
    %s30 = ssub.s32 %s17, %s24
    %s31 = sor.u32 %s29, %s30
    %p32 = scmp.eq.s32.totalorder %s31, 0
    %s34 = sadd.s32 %s33, 1
    %s35 = scalar_select %p32, %s33, %s34
    %p38 = pneg %p32
    %p39 = scmp.eq.s32.totalorder %s9, 1
    %p40 = por %p38, %p39
    %p41 = scmp.ne.s32.totalorder %s33, %s36
    %p42 = scmp.eq.s32.totalorder %s9, 0
    %p43 = por %p41, %p42
    %p44 = scmp.ne.s32.totalorder %s33, %s36
    %p45 = scmp.eq.s32.totalorder %s14, 1
    %p46 = por %p44, %p45
    %p47 = scmp.ne.s32.totalorder %s36, %s37
    %p48 = scmp.eq.s32.totalorder %s14, 0
    %p49 = por %p47, %p48
    %p50 = scmp.ne.s32.totalorder %s36, %s37
    %p51 = scmp.eq.s32.totalorder %s15, 1
    %p52 = por %p50, %p51
    %p54 = scmp.ne.s32.totalorder %s37, %s53
    %p55 = scmp.eq.s32.totalorder %s15, 0
    %p56 = por %p54, %p55
    %s58 = sadd.s32 %s57, 1
    %p61 = scmp.eq.s32.totalorder %s9, 1
    %p62 = scmp.ne.s32.totalorder %s57, %s59
    %p63 = scmp.eq.s32.totalorder %s9, 0
    %p64 = por %p62, %p63
    %p65 = scmp.ne.s32.totalorder %s57, %s59
    %p66 = scmp.eq.s32.totalorder %s14, 1
    %p67 = por %p65, %p66
    %p68 = scmp.ne.s32.totalorder %s59, %s60
    %p69 = scmp.eq.s32.totalorder %s14, 0
    %p70 = por %p68, %p69
    %p71 = scmp.ne.s32.totalorder %s59, %s60
    %p72 = scmp.eq.s32.totalorder %s15, 1
    %p73 = por %p71, %p72
    %p75 = scmp.ne.s32.totalorder %s60, %s74
    %p76 = scmp.eq.s32.totalorder %s15, 0
    %p77 = por %p75, %p76
    %s79 = sadd.s32 %s78, 1
    %p82 = scmp.eq.s32.totalorder %s9, 1
    %p83 = scmp.ne.s32.totalorder %s78, %s80
    %p84 = scmp.eq.s32.totalorder %s9, 0
    %p85 = por %p83, %p84
    %p86 = scmp.ne.s32.totalorder %s78, %s80
    %p87 = scmp.eq.s32.totalorder %s14, 1
    %p88 = por %p86, %p87
    %p89 = scmp.ne.s32.totalorder %s80, %s81
    %p90 = scmp.eq.s32.totalorder %s14, 0
    %p91 = por %p89, %p90
    %p92 = scmp.ne.s32.totalorder %s80, %s81
    %p93 = scmp.eq.s32.totalorder %s15, 1
    %p94 = por %p92, %p93
    %p96 = scmp.ne.s32.totalorder %s81, %s95
    %p97 = scmp.eq.s32.totalorder %s15, 0
    %p98 = por %p96, %p97
    %s99 = ssub.s32 %s16, %s28
    %s100 = ssub.s32 %s17, %s24
    %s101 = sor.u32 %s99, %s100
    %p102 = scmp.eq.s32.totalorder %s101, 0
    %s104 = sadd.s32 %s103, 1
    %s105 = scalar_select %p102, %s103, %s104
    %p108 = pneg %p102
    %p109 = scmp.eq.s32.totalorder %s9, 1
    %p110 = por %p108, %p109
    %p111 = scmp.ne.s32.totalorder %s103, %s106
    %p112 = scmp.eq.s32.totalorder %s9, 0
    %p113 = por %p111, %p112
    %p114 = scmp.ne.s32.totalorder %s103, %s106
    %p115 = scmp.eq.s32.totalorder %s14, 1
    %p116 = por %p114, %p115
    %p117 = scmp.ne.s32.totalorder %s106, %s107
    %p118 = scmp.eq.s32.totalorder %s14, 0
    %p119 = por %p117, %p118
    %p120 = scmp.ne.s32.totalorder %s106, %s107
    %p121 = scmp.eq.s32.totalorder %s15, 1
    %p122 = por %p120, %p121
    %p124 = scmp.ne.s32.totalorder %s107, %s123
    %p125 = scmp.eq.s32.totalorder %s15, 0
    %p126 = por %p124, %p125
    %p127 = scmp.le.s32.totalorder 1, %s9
    %p128 = scmp.lt.s32.totalorder %s9, 3
    %p129 = pnand %p127, %p128
    %p130 = pneg %p129
    // Predicated region
    $region9: #{output_transition_forward.1} parent=5 // pred_check
      _
    $region10: #{output_transition_forward.1} parent=5 // pred_check_branch
      %132 = sbr.rel (%p129) target = $region12
    $region11: #{output_transition_forward.1} parent=5 // pred_region
      %s133 = ssub.s32 %s9, 1
      // Predicated region
      $region13: #{output_transition_forward.1} parent=11 // pred_check
        %p134 = pneg %p70
      $region14: #{output_transition_forward.1} parent=11 // pred_check_branch
        %136 = sbr.rel (%p134) target = $region16
      $region15: #{output_transition_forward.1} parent=11 // pred_region
        _
      $region16: #{output_transition_forward.1} parent=11 // pred_fallthru
        _
      // Predicated region
      $region17: #{output_transition_forward.1} parent=11 // pred_check
        %p137 = pneg %p91
      $region18: #{output_transition_forward.1} parent=11 // pred_check_branch
        %139 = sbr.rel (%p137) target = $region20
      $region19: #{output_transition_forward.1} parent=11 // pred_region
        _
      $region20: #{output_transition_forward.1} parent=11 // pred_fallthru
        _
    $region12: #{output_transition_forward.1} parent=5 // pred_fallthru
      _
    %p140 = scmp.lt.s32.totalorder %s9, 2
    // Predicated region
    $region21: #{output_transition_forward.1} parent=5 // pred_check
      %p141 = pneg %p140
    $region22: #{output_transition_forward.1} parent=5 // pred_check_branch
      %143 = sbr.rel (%p141) target = $region24
    $region23: #{output_transition_forward.1} parent=5 // pred_region
      // Predicated region
      $region25: #{output_transition_forward.1} parent=23 // pred_check
        %p144 = pneg %p43
      $region26: #{output_transition_forward.1} parent=23 // pred_check_branch
        %146 = sbr.rel (%p144) target = $region28
      $region27: #{output_transition_forward.1} parent=23 // pred_region
        %s147 = smul.u32 32, %s17
        %p148 = scmp.lt.s32.totalorder %s16, 1
        %s149 = scalar_select %p148, %s16, 1
        %p150 = scmp.lt.s32.totalorder %s147, 31
        %s151 = scalar_select %p150, %s147, 31
        %s152 = smul.addr %s149, 128
        %s153 = sadd.s32 %s151, %s152
        %s154 = smul.addr %s153, 8
        %s155 = scalar_lea.vmem %s0, %s154
        %s156 = smul.u32 32, %s17
      $region28: #{output_transition_forward.1} parent=23 // pred_fallthru
        _
    $region24: #{output_transition_forward.1} parent=5 // pred_fallthru
      _
    %p157 = scmp.le.s32.totalorder 1, %s9
    %p158 = scmp.lt.s32.totalorder %s9, 3
    %p159 = pnand %p157, %p158
    %p160 = pneg %p159
    // Predicated region
    $region29: #{output_transition_forward.1} parent=5 // pred_check
      _
    $region30: #{output_transition_forward.1} parent=5 // pred_check_branch
      %162 = sbr.rel (%p159) target = $region32
    $region31: #{output_transition_forward.1} parent=5 // pred_region
      %s163 = ssub.s32 %s9, 1
      %s164 = smul.u32 32, %s19
      %p165 = scmp.lt.s32.totalorder %s18, 1
      %s166 = scalar_select %p165, %s18, 1
      %p167 = scmp.lt.s32.totalorder %s164, 31
      %s168 = scalar_select %p167, %s164, 31
      %s169 = smul.addr %s166, 128
      %s170 = sadd.s32 %s168, %s169
      %s171 = smul.addr %s170, 8
      %s172 = scalar_lea.vmem %s0, %s171
      %p173 = pneg %p49
      %p174 = pneg %p46
      %p175 = pneg %p70
      %p176 = pneg %p67
      %p177 = pneg %p91
      %p178 = pneg %p88
      %p179 = pneg %p119
      %p180 = pneg %p116
      %s181 = smul.u32 32, %s19
      %p182 = scmp.lt.s32.totalorder %s18, 1
      %s183 = scalar_select %p182, %s18, 1
      %p184 = scmp.lt.s32.totalorder %s181, 31
      %s185 = scalar_select %p184, %s181, 31
      %s186 = smul.addr %s183, 32
      %s187 = sadd.s32 %s185, %s186
      %s188 = smul.addr %s187, 8
      %s189 = scalar_lea.vmem %s3, %s188
      %s190 = smul.u32 32, %s19
      %p191 = scmp.lt.s32.totalorder %s18, 1
      %s192 = scalar_select %p191, %s18, 1
      %p193 = scmp.lt.s32.totalorder %s190, 31
      %s194 = scalar_select %p193, %s190, 31
      %s195 = smul.addr %s192, 128
      %s196 = sadd.s32 %s194, %s195
      %s197 = smul.addr %s196, 8
      %s198 = scalar_lea.vmem %s0, %s197
      %s199 = smul.u32 32, %s19
      %s200 = smul.u32 32, %s19
      %p201 = scmp.lt.s32.totalorder %s18, 1
      %s202 = scalar_select %p201, %s18, 1
      %p203 = scmp.lt.s32.totalorder %s200, 31
      %s204 = scalar_select %p203, %s200, 31
      %s205 = smul.addr %s202, 32
      %s206 = sadd.s32 %s204, %s205
      %s207 = smul.addr %s206, 8
      %s208 = scalar_lea.vmem %s3, %s207
      %s209 = smul.u32 32, %s19
      %v210 = vld [vmem:[%s1] sm:$0xff]
      %v211 = vld [vmem:[%s198] sm:$0xff]
      %v212 = vld [vmem:[%s198 + $0x8] sm:$0xff]
      %v213 = vld [vmem:[%s198 + $0x10] sm:$0xff]
      %v214 = vld [vmem:[%s198 + $0x18] sm:$0xff]
      %v215 = vld [vmem:[%s198 + $0x20] sm:$0xff]
      %v216 = vld [vmem:[%s198 + $0x28] sm:$0xff]
      %v217 = vld [vmem:[%s198 + $0x30] sm:$0xff]
      %v218 = vld [vmem:[%s198 + $0x38] sm:$0xff]
      %v219 = vld [vmem:[%s198 + $0x40] sm:$0xff]
      %v220 = vld [vmem:[%s198 + $0x48] sm:$0xff]
      %v221 = vld [vmem:[%s198 + $0x50] sm:$0xff]
      %v222 = vld [vmem:[%s198 + $0x58] sm:$0xff]
      %v223 = vld [vmem:[%s198 + $0x60] sm:$0xff]
      %v224 = vld [vmem:[%s198 + $0x68] sm:$0xff]
      %v225 = vld [vmem:[%s198 + $0x70] sm:$0xff]
      %v226 = vld [vmem:[%s198 + $0x78] sm:$0xff]
      %v227 = vld [vmem:[%s198 + $0x80] sm:$0xff]
      %v228 = vld [vmem:[%s198 + $0x88] sm:$0xff]
      %v229 = vld [vmem:[%s198 + $0x90] sm:$0xff]
      %v230 = vld [vmem:[%s198 + $0x98] sm:$0xff]
      %v231 = vld [vmem:[%s198 + $0xa0] sm:$0xff]
      %v232 = vld [vmem:[%s198 + $0xa8] sm:$0xff]
      %v233 = vld [vmem:[%s198 + $0xb0] sm:$0xff]
      %v234 = vld [vmem:[%s198 + $0xb8] sm:$0xff]
      %v235 = vld [vmem:[%s198 + $0xc0] sm:$0xff]
      %v236 = vld [vmem:[%s198 + $0xc8] sm:$0xff]
      %v237 = vld [vmem:[%s198 + $0xd0] sm:$0xff]
      %v238 = vld [vmem:[%s198 + $0xd8] sm:$0xff]
      %v239 = vld [vmem:[%s198 + $0xe0] sm:$0xff]
      %v240 = vld [vmem:[%s198 + $0xe8] sm:$0xff]
      %v241 = vld [vmem:[%s198 + $0xf0] sm:$0xff]
      %v242 = vld [vmem:[%s198 + $0xf8] sm:$0xff]
      %v243 = vld [vmem:[%s198 + $0x100] sm:$0xff]
      %v244 = vld [vmem:[%s198 + $0x108] sm:$0xff]
      %v245 = vld [vmem:[%s198 + $0x110] sm:$0xff]
      %v246 = vld [vmem:[%s198 + $0x118] sm:$0xff]
      %v247 = vld [vmem:[%s198 + $0x120] sm:$0xff]
      %v248 = vld [vmem:[%s198 + $0x128] sm:$0xff]
      %v249 = vld [vmem:[%s198 + $0x130] sm:$0xff]
      %v250 = vld [vmem:[%s198 + $0x138] sm:$0xff]
      %v251 = vld [vmem:[%s198 + $0x140] sm:$0xff]
      %v252 = vld [vmem:[%s198 + $0x148] sm:$0xff]
      %v253 = vld [vmem:[%s198 + $0x150] sm:$0xff]
      %v254 = vld [vmem:[%s198 + $0x158] sm:$0xff]
      %v255 = vld [vmem:[%s198 + $0x160] sm:$0xff]
      %v256 = vld [vmem:[%s198 + $0x168] sm:$0xff]
      %v257 = vld [vmem:[%s198 + $0x170] sm:$0xff]
      %v258 = vld [vmem:[%s198 + $0x178] sm:$0xff]
      %v259 = vld [vmem:[%s198 + $0x180] sm:$0xff]
      %v260 = vld [vmem:[%s198 + $0x188] sm:$0xff]
      %v261 = vld [vmem:[%s198 + $0x190] sm:$0xff]
      %v262 = vld [vmem:[%s198 + $0x198] sm:$0xff]
      %v263 = vld [vmem:[%s198 + $0x1a0] sm:$0xff]
      %v264 = vld [vmem:[%s198 + $0x1a8] sm:$0xff]
      %v265 = vld [vmem:[%s198 + $0x1b0] sm:$0xff]
      %v266 = vld [vmem:[%s198 + $0x1b8] sm:$0xff]
      %v267 = vld [vmem:[%s198 + $0x1c0] sm:$0xff]
      %v268 = vld [vmem:[%s198 + $0x1c8] sm:$0xff]
      %v269 = vld [vmem:[%s198 + $0x1d0] sm:$0xff]
      %v270 = vld [vmem:[%s198 + $0x1d8] sm:$0xff]
      %v271 = vld [vmem:[%s198 + $0x1e0] sm:$0xff]
      %v272 = vld [vmem:[%s198 + $0x1e8] sm:$0xff]
      %v273 = vld [vmem:[%s198 + $0x1f0] sm:$0xff]
      %v274 = vld [vmem:[%s198 + $0x1f8] sm:$0xff]
      %v275 = vld [vmem:[%s198 + $0x200] sm:$0xff]
      %v276 = vld [vmem:[%s198 + $0x208] sm:$0xff]
      %v277 = vld [vmem:[%s198 + $0x210] sm:$0xff]
      %v278 = vld [vmem:[%s198 + $0x218] sm:$0xff]
      %v279 = vld [vmem:[%s198 + $0x220] sm:$0xff]
      %v280 = vld [vmem:[%s198 + $0x228] sm:$0xff]
      %v281 = vld [vmem:[%s198 + $0x230] sm:$0xff]
      %v282 = vld [vmem:[%s198 + $0x238] sm:$0xff]
      %v283 = vld [vmem:[%s198 + $0x240] sm:$0xff]
      %v284 = vld [vmem:[%s198 + $0x248] sm:$0xff]
      %v285 = vld [vmem:[%s198 + $0x250] sm:$0xff]
      %v286 = vld [vmem:[%s198 + $0x258] sm:$0xff]
      %v287 = vld [vmem:[%s198 + $0x260] sm:$0xff]
      %v288 = vld [vmem:[%s198 + $0x268] sm:$0xff]
      %v289 = vld [vmem:[%s198 + $0x270] sm:$0xff]
      %v290 = vld [vmem:[%s198 + $0x278] sm:$0xff]
      %v291 = vld [vmem:[%s198 + $0x280] sm:$0xff]
      %v292 = vld [vmem:[%s198 + $0x288] sm:$0xff]
      %v293 = vld [vmem:[%s198 + $0x290] sm:$0xff]
      %v294 = vld [vmem:[%s198 + $0x298] sm:$0xff]
      %v295 = vld [vmem:[%s198 + $0x2a0] sm:$0xff]
      %v296 = vld [vmem:[%s198 + $0x2a8] sm:$0xff]
      %v297 = vld [vmem:[%s198 + $0x2b0] sm:$0xff]
      %v298 = vld [vmem:[%s198 + $0x2b8] sm:$0xff]
      %v299 = vld [vmem:[%s198 + $0x2c0] sm:$0xff]
      %v300 = vld [vmem:[%s198 + $0x2c8] sm:$0xff]
      %v301 = vld [vmem:[%s198 + $0x2d0] sm:$0xff]
      %v302 = vld [vmem:[%s198 + $0x2d8] sm:$0xff]
      %v303 = vld [vmem:[%s198 + $0x2e0] sm:$0xff]
      %v304 = vld [vmem:[%s198 + $0x2e8] sm:$0xff]
      %v305 = vld [vmem:[%s198 + $0x2f0] sm:$0xff]
      %v306 = vld [vmem:[%s198 + $0x2f8] sm:$0xff]
      %v307 = vld [vmem:[%s198 + $0x300] sm:$0xff]
      %v308 = vld [vmem:[%s198 + $0x308] sm:$0xff]
      %v309 = vld [vmem:[%s198 + $0x310] sm:$0xff]
      %v310 = vld [vmem:[%s198 + $0x318] sm:$0xff]
      %v311 = vld [vmem:[%s198 + $0x320] sm:$0xff]
      %v312 = vld [vmem:[%s198 + $0x328] sm:$0xff]
      %v313 = vld [vmem:[%s198 + $0x330] sm:$0xff]
      %v314 = vld [vmem:[%s198 + $0x338] sm:$0xff]
      %v315 = vld [vmem:[%s198 + $0x340] sm:$0xff]
      %v316 = vld [vmem:[%s198 + $0x348] sm:$0xff]
      %v317 = vld [vmem:[%s198 + $0x350] sm:$0xff]
      %v318 = vld [vmem:[%s198 + $0x358] sm:$0xff]
      %v319 = vld [vmem:[%s198 + $0x360] sm:$0xff]
      %v320 = vld [vmem:[%s198 + $0x368] sm:$0xff]
      %v321 = vld [vmem:[%s198 + $0x370] sm:$0xff]
      %v322 = vld [vmem:[%s198 + $0x378] sm:$0xff]
      %v323 = vld [vmem:[%s198 + $0x380] sm:$0xff]
      %v324 = vld [vmem:[%s198 + $0x388] sm:$0xff]
      %v325 = vld [vmem:[%s198 + $0x390] sm:$0xff]
      %v326 = vld [vmem:[%s198 + $0x398] sm:$0xff]
      %v327 = vld [vmem:[%s198 + $0x3a0] sm:$0xff]
      %v328 = vld [vmem:[%s198 + $0x3a8] sm:$0xff]
      %v329 = vld [vmem:[%s198 + $0x3b0] sm:$0xff]
      %v330 = vld [vmem:[%s198 + $0x3b8] sm:$0xff]
      %v331 = vld [vmem:[%s198 + $0x3c0] sm:$0xff]
      %v332 = vld [vmem:[%s198 + $0x3c8] sm:$0xff]
      %v333 = vld [vmem:[%s198 + $0x3d0] sm:$0xff]
      %v334 = vld [vmem:[%s198 + $0x3d8] sm:$0xff]
      %v335 = vld [vmem:[%s198 + $0x3e0] sm:$0xff]
      %v336 = vld [vmem:[%s198 + $0x3e8] sm:$0xff]
      %v337 = vld [vmem:[%s198 + $0x3f0] sm:$0xff]
      %v338 = vld [vmem:[%s198 + $0x3f8] sm:$0xff]
      %v339 = vld [vmem:[%s2] sm:$0xff]
      %341 = vset.pattern.permute.xlu0 0
      %342 = vperm.xlu0 %341, %v339
      %v343 = vpop.permute.xlu0 %342
      %vm345 = vcmask 261120
      %v347 = vsel %vm345, %v210, 0
      %349 = vmatpush.msra.mxu0 0.0
      %350 = vmatpush.msra.mxu0 0.0
      %351 = vmatpush.msra.mxu0 0.0
      %352 = vmatpush.msra.mxu0 0.0
      %353 = vmatpush.msra.mxu0 0.0
      %354 = vmatpush.msra.mxu0 0.0
      %355 = vmatpush.msra.mxu0 0.0
      %356 = vmatpush.msra.mxu0 0.0
      %357 = vmatpush.msra.mxu0 0.0
      %358 = vmatpush.msra.mxu0 0.0
      %359 = vmatpush.msra.mxu0 0.0
      %360 = vmatpush.msra.mxu0 0.0
      %361 = vmatpush.msra.mxu0 %v307
      %362 = vmatpush.msra.mxu0 %v275
      %363 = vmatpush.msra.mxu0 %v243
      %364 = vmatpush.msra.mxu0 %v211
      %365 = vmatmul.f32.gmra.mxu0 %v347
      %v366 = vpop.f32.mrf.mxu0
      %v367 = vadd.f32 %v343, %v366
      %368 = vdwg.mxu0
      %369 = vmatpush.msra.mxu0 0.0
      %370 = vmatpush.msra.mxu0 0.0
      %371 = vmatpush.msra.mxu0 0.0
      %372 = vmatpush.msra.mxu0 0.0
      %373 = vmatpush.msra.mxu0 0.0
      %374 = vmatpush.msra.mxu0 0.0
      %375 = vmatpush.msra.mxu0 0.0
      %376 = vmatpush.msra.mxu0 0.0
      %377 = vmatpush.msra.mxu0 0.0
      %378 = vmatpush.msra.mxu0 0.0
      %379 = vmatpush.msra.mxu0 0.0
      %380 = vmatpush.msra.mxu0 0.0
      %381 = vmatpush.msra.mxu0 %v308
      %382 = vmatpush.msra.mxu0 %v276
      %383 = vmatpush.msra.mxu0 %v244
      %384 = vmatpush.msra.mxu0 %v212
      %385 = vmatmul.f32.gmra.mxu0 %v347
      %v386 = vpop.f32.mrf.mxu0
      %v387 = vadd.f32 %v343, %v386
      %388 = vdwg.mxu0
      %389 = vmatpush.msra.mxu0 0.0
      %390 = vmatpush.msra.mxu0 0.0
      %391 = vmatpush.msra.mxu0 0.0
      %392 = vmatpush.msra.mxu0 0.0
      %393 = vmatpush.msra.mxu0 0.0
      %394 = vmatpush.msra.mxu0 0.0
      %395 = vmatpush.msra.mxu0 0.0
      %396 = vmatpush.msra.mxu0 0.0
      %397 = vmatpush.msra.mxu0 0.0
      %398 = vmatpush.msra.mxu0 0.0
      %399 = vmatpush.msra.mxu0 0.0
      %400 = vmatpush.msra.mxu0 0.0
      %401 = vmatpush.msra.mxu0 %v309
      %402 = vmatpush.msra.mxu0 %v277
      %403 = vmatpush.msra.mxu0 %v245
      %404 = vmatpush.msra.mxu0 %v213
      %405 = vmatmul.f32.gmra.mxu0 %v347
      %v406 = vpop.f32.mrf.mxu0
      %v407 = vadd.f32 %v343, %v406
      %408 = vdwg.mxu0
      %409 = vmatpush.msra.mxu0 0.0
      %410 = vmatpush.msra.mxu0 0.0
      %411 = vmatpush.msra.mxu0 0.0
      %412 = vmatpush.msra.mxu0 0.0
      %413 = vmatpush.msra.mxu0 0.0
      %414 = vmatpush.msra.mxu0 0.0
      %415 = vmatpush.msra.mxu0 0.0
      %416 = vmatpush.msra.mxu0 0.0
      %417 = vmatpush.msra.mxu0 0.0
      %418 = vmatpush.msra.mxu0 0.0
      %419 = vmatpush.msra.mxu0 0.0
      %420 = vmatpush.msra.mxu0 0.0
      %421 = vmatpush.msra.mxu0 %v310
      %422 = vmatpush.msra.mxu0 %v278
      %423 = vmatpush.msra.mxu0 %v246
      %424 = vmatpush.msra.mxu0 %v214
      %425 = vmatmul.f32.gmra.mxu0 %v347
      %v426 = vpop.f32.mrf.mxu0
      %v427 = vadd.f32 %v343, %v426
      %428 = vdwg.mxu0
      %429 = vmatpush.msra.mxu0 0.0
      %430 = vmatpush.msra.mxu0 0.0
      %431 = vmatpush.msra.mxu0 0.0
      %432 = vmatpush.msra.mxu0 0.0
      %433 = vmatpush.msra.mxu0 0.0
      %434 = vmatpush.msra.mxu0 0.0
      %435 = vmatpush.msra.mxu0 0.0
      %436 = vmatpush.msra.mxu0 0.0
      %437 = vmatpush.msra.mxu0 0.0
      %438 = vmatpush.msra.mxu0 0.0
      %439 = vmatpush.msra.mxu0 0.0
      %440 = vmatpush.msra.mxu0 0.0
      %441 = vmatpush.msra.mxu0 %v311
      %442 = vmatpush.msra.mxu0 %v279
      %443 = vmatpush.msra.mxu0 %v247
      %444 = vmatpush.msra.mxu0 %v215
      %445 = vmatmul.f32.gmra.mxu0 %v347
      %v446 = vpop.f32.mrf.mxu0
      %v447 = vadd.f32 %v343, %v446
      %448 = vdwg.mxu0
      %449 = vmatpush.msra.mxu0 0.0
      %450 = vmatpush.msra.mxu0 0.0
      %451 = vmatpush.msra.mxu0 0.0
      %452 = vmatpush.msra.mxu0 0.0
      %453 = vmatpush.msra.mxu0 0.0
      %454 = vmatpush.msra.mxu0 0.0
      %455 = vmatpush.msra.mxu0 0.0
      %456 = vmatpush.msra.mxu0 0.0
      %457 = vmatpush.msra.mxu0 0.0
      %458 = vmatpush.msra.mxu0 0.0
      %459 = vmatpush.msra.mxu0 0.0
      %460 = vmatpush.msra.mxu0 0.0
      %461 = vmatpush.msra.mxu0 %v312
      %462 = vmatpush.msra.mxu0 %v280
      %463 = vmatpush.msra.mxu0 %v248
      %464 = vmatpush.msra.mxu0 %v216
      %465 = vmatmul.f32.gmra.mxu0 %v347
      %v466 = vpop.f32.mrf.mxu0
      %v467 = vadd.f32 %v343, %v466
      %468 = vdwg.mxu0
      %469 = vmatpush.msra.mxu0 0.0
      %470 = vmatpush.msra.mxu0 0.0
      %471 = vmatpush.msra.mxu0 0.0
      %472 = vmatpush.msra.mxu0 0.0
      %473 = vmatpush.msra.mxu0 0.0
      %474 = vmatpush.msra.mxu0 0.0
      %475 = vmatpush.msra.mxu0 0.0
      %476 = vmatpush.msra.mxu0 0.0
      %477 = vmatpush.msra.mxu0 0.0
      %478 = vmatpush.msra.mxu0 0.0
      %479 = vmatpush.msra.mxu0 0.0
      %480 = vmatpush.msra.mxu0 0.0
      %481 = vmatpush.msra.mxu0 %v313
      %482 = vmatpush.msra.mxu0 %v281
      %483 = vmatpush.msra.mxu0 %v249
      %484 = vmatpush.msra.mxu0 %v217
      %485 = vmatmul.f32.gmra.mxu0 %v347
      %v486 = vpop.f32.mrf.mxu0
      %v487 = vadd.f32 %v343, %v486
      %488 = vdwg.mxu0
      %489 = vmatpush.msra.mxu0 0.0
      %490 = vmatpush.msra.mxu0 0.0
      %491 = vmatpush.msra.mxu0 0.0
      %492 = vmatpush.msra.mxu0 0.0
      %493 = vmatpush.msra.mxu0 0.0
      %494 = vmatpush.msra.mxu0 0.0
      %495 = vmatpush.msra.mxu0 0.0
      %496 = vmatpush.msra.mxu0 0.0
      %497 = vmatpush.msra.mxu0 0.0
      %498 = vmatpush.msra.mxu0 0.0
      %499 = vmatpush.msra.mxu0 0.0
      %500 = vmatpush.msra.mxu0 0.0
      %501 = vmatpush.msra.mxu0 %v314
      %502 = vmatpush.msra.mxu0 %v282
      %503 = vmatpush.msra.mxu0 %v250
      %504 = vmatpush.msra.mxu0 %v218
      %505 = vmatmul.f32.gmra.mxu0 %v347
      %v506 = vpop.f32.mrf.mxu0
      %v507 = vadd.f32 %v343, %v506
      %508 = vdwg.mxu0
      %509 = vmatpush.msra.mxu0 0.0
      %510 = vmatpush.msra.mxu0 0.0
      %511 = vmatpush.msra.mxu0 0.0
      %512 = vmatpush.msra.mxu0 0.0
      %513 = vmatpush.msra.mxu0 0.0
      %514 = vmatpush.msra.mxu0 0.0
      %515 = vmatpush.msra.mxu0 0.0
      %516 = vmatpush.msra.mxu0 0.0
      %517 = vmatpush.msra.mxu0 0.0
      %518 = vmatpush.msra.mxu0 0.0
      %519 = vmatpush.msra.mxu0 0.0
      %520 = vmatpush.msra.mxu0 0.0
      %521 = vmatpush.msra.mxu0 %v315
      %522 = vmatpush.msra.mxu0 %v283
      %523 = vmatpush.msra.mxu0 %v251
      %524 = vmatpush.msra.mxu0 %v219
      %525 = vmatmul.f32.gmra.mxu0 %v347
      %v526 = vpop.f32.mrf.mxu0
      %v527 = vadd.f32 %v343, %v526
      %528 = vdwg.mxu0
      %529 = vmatpush.msra.mxu0 0.0
      %530 = vmatpush.msra.mxu0 0.0
      %531 = vmatpush.msra.mxu0 0.0
      %532 = vmatpush.msra.mxu0 0.0
      %533 = vmatpush.msra.mxu0 0.0
      %534 = vmatpush.msra.mxu0 0.0
      %535 = vmatpush.msra.mxu0 0.0
      %536 = vmatpush.msra.mxu0 0.0
      %537 = vmatpush.msra.mxu0 0.0
      %538 = vmatpush.msra.mxu0 0.0
      %539 = vmatpush.msra.mxu0 0.0
      %540 = vmatpush.msra.mxu0 0.0
      %541 = vmatpush.msra.mxu0 %v316
      %542 = vmatpush.msra.mxu0 %v284
      %543 = vmatpush.msra.mxu0 %v252
      %544 = vmatpush.msra.mxu0 %v220
      %545 = vmatmul.f32.gmra.mxu0 %v347
      %v546 = vpop.f32.mrf.mxu0
      %v547 = vadd.f32 %v343, %v546
      %548 = vdwg.mxu0
      %549 = vmatpush.msra.mxu0 0.0
      %550 = vmatpush.msra.mxu0 0.0
      %551 = vmatpush.msra.mxu0 0.0
      %552 = vmatpush.msra.mxu0 0.0
      %553 = vmatpush.msra.mxu0 0.0
      %554 = vmatpush.msra.mxu0 0.0
      %555 = vmatpush.msra.mxu0 0.0
      %556 = vmatpush.msra.mxu0 0.0
      %557 = vmatpush.msra.mxu0 0.0
      %558 = vmatpush.msra.mxu0 0.0
      %559 = vmatpush.msra.mxu0 0.0
      %560 = vmatpush.msra.mxu0 0.0
      %561 = vmatpush.msra.mxu0 %v317
      %562 = vmatpush.msra.mxu0 %v285
      %563 = vmatpush.msra.mxu0 %v253
      %564 = vmatpush.msra.mxu0 %v221
      %565 = vmatmul.f32.gmra.mxu0 %v347
      %v566 = vpop.f32.mrf.mxu0
      %v567 = vadd.f32 %v343, %v566
      %568 = vdwg.mxu0
      %569 = vmatpush.msra.mxu0 0.0
      %570 = vmatpush.msra.mxu0 0.0
      %571 = vmatpush.msra.mxu0 0.0
      %572 = vmatpush.msra.mxu0 0.0
      %573 = vmatpush.msra.mxu0 0.0
      %574 = vmatpush.msra.mxu0 0.0
      %575 = vmatpush.msra.mxu0 0.0
      %576 = vmatpush.msra.mxu0 0.0
      %577 = vmatpush.msra.mxu0 0.0
      %578 = vmatpush.msra.mxu0 0.0
      %579 = vmatpush.msra.mxu0 0.0
      %580 = vmatpush.msra.mxu0 0.0
      %581 = vmatpush.msra.mxu0 %v318
      %582 = vmatpush.msra.mxu0 %v286
      %583 = vmatpush.msra.mxu0 %v254
      %584 = vmatpush.msra.mxu0 %v222
      %585 = vmatmul.f32.gmra.mxu0 %v347
      %v586 = vpop.f32.mrf.mxu0
      %v587 = vadd.f32 %v343, %v586
      %588 = vdwg.mxu0
      %589 = vmatpush.msra.mxu0 0.0
      %590 = vmatpush.msra.mxu0 0.0
      %591 = vmatpush.msra.mxu0 0.0
      %592 = vmatpush.msra.mxu0 0.0
      %593 = vmatpush.msra.mxu0 0.0
      %594 = vmatpush.msra.mxu0 0.0
      %595 = vmatpush.msra.mxu0 0.0
      %596 = vmatpush.msra.mxu0 0.0
      %597 = vmatpush.msra.mxu0 0.0
      %598 = vmatpush.msra.mxu0 0.0
      %599 = vmatpush.msra.mxu0 0.0
      %600 = vmatpush.msra.mxu0 0.0
      %601 = vmatpush.msra.mxu0 %v319
      %602 = vmatpush.msra.mxu0 %v287
      %603 = vmatpush.msra.mxu0 %v255
      %604 = vmatpush.msra.mxu0 %v223
      %605 = vmatmul.f32.gmra.mxu0 %v347
      %v606 = vpop.f32.mrf.mxu0
      %v607 = vadd.f32 %v343, %v606
      %608 = vdwg.mxu0
      %609 = vmatpush.msra.mxu0 0.0
      %610 = vmatpush.msra.mxu0 0.0
      %611 = vmatpush.msra.mxu0 0.0
      %612 = vmatpush.msra.mxu0 0.0
      %613 = vmatpush.msra.mxu0 0.0
      %614 = vmatpush.msra.mxu0 0.0
      %615 = vmatpush.msra.mxu0 0.0
      %616 = vmatpush.msra.mxu0 0.0
      %617 = vmatpush.msra.mxu0 0.0
      %618 = vmatpush.msra.mxu0 0.0
      %619 = vmatpush.msra.mxu0 0.0
      %620 = vmatpush.msra.mxu0 0.0
      %621 = vmatpush.msra.mxu0 %v320
      %622 = vmatpush.msra.mxu0 %v288
      %623 = vmatpush.msra.mxu0 %v256
      %624 = vmatpush.msra.mxu0 %v224
      %625 = vmatmul.f32.gmra.mxu0 %v347
      %v626 = vpop.f32.mrf.mxu0
      %v627 = vadd.f32 %v343, %v626
      %628 = vdwg.mxu0
      %629 = vmatpush.msra.mxu0 0.0
      %630 = vmatpush.msra.mxu0 0.0
      %631 = vmatpush.msra.mxu0 0.0
      %632 = vmatpush.msra.mxu0 0.0
      %633 = vmatpush.msra.mxu0 0.0
      %634 = vmatpush.msra.mxu0 0.0
      %635 = vmatpush.msra.mxu0 0.0
      %636 = vmatpush.msra.mxu0 0.0
      %637 = vmatpush.msra.mxu0 0.0
      %638 = vmatpush.msra.mxu0 0.0
      %639 = vmatpush.msra.mxu0 0.0
      %640 = vmatpush.msra.mxu0 0.0
      %641 = vmatpush.msra.mxu0 %v321
      %642 = vmatpush.msra.mxu0 %v289
      %643 = vmatpush.msra.mxu0 %v257
      %644 = vmatpush.msra.mxu0 %v225
      %645 = vmatmul.f32.gmra.mxu0 %v347
      %v646 = vpop.f32.mrf.mxu0
      %v647 = vadd.f32 %v343, %v646
      %648 = vdwg.mxu0
      %649 = vmatpush.msra.mxu0 0.0
      %650 = vmatpush.msra.mxu0 0.0
      %651 = vmatpush.msra.mxu0 0.0
      %652 = vmatpush.msra.mxu0 0.0
      %653 = vmatpush.msra.mxu0 0.0
      %654 = vmatpush.msra.mxu0 0.0
      %655 = vmatpush.msra.mxu0 0.0
      %656 = vmatpush.msra.mxu0 0.0
      %657 = vmatpush.msra.mxu0 0.0
      %658 = vmatpush.msra.mxu0 0.0
      %659 = vmatpush.msra.mxu0 0.0
      %660 = vmatpush.msra.mxu0 0.0
      %661 = vmatpush.msra.mxu0 %v322
      %662 = vmatpush.msra.mxu0 %v290
      %663 = vmatpush.msra.mxu0 %v258
      %664 = vmatpush.msra.mxu0 %v226
      %665 = vmatmul.f32.gmra.mxu0 %v347
      %v666 = vpop.f32.mrf.mxu0
      %v667 = vadd.f32 %v343, %v666
      %668 = vdwg.mxu0
      %669 = vmatpush.msra.mxu0 0.0
      %670 = vmatpush.msra.mxu0 0.0
      %671 = vmatpush.msra.mxu0 0.0
      %672 = vmatpush.msra.mxu0 0.0
      %673 = vmatpush.msra.mxu0 0.0
      %674 = vmatpush.msra.mxu0 0.0
      %675 = vmatpush.msra.mxu0 0.0
      %676 = vmatpush.msra.mxu0 0.0
      %677 = vmatpush.msra.mxu0 0.0
      %678 = vmatpush.msra.mxu0 0.0
      %679 = vmatpush.msra.mxu0 0.0
      %680 = vmatpush.msra.mxu0 0.0
      %681 = vmatpush.msra.mxu0 %v323
      %682 = vmatpush.msra.mxu0 %v291
      %683 = vmatpush.msra.mxu0 %v259
      %684 = vmatpush.msra.mxu0 %v227
      %685 = vmatmul.f32.gmra.mxu0 %v347
      %v686 = vpop.f32.mrf.mxu0
      %v687 = vadd.f32 %v343, %v686
      %688 = vdwg.mxu0
      %689 = vmatpush.msra.mxu0 0.0
      %690 = vmatpush.msra.mxu0 0.0
      %691 = vmatpush.msra.mxu0 0.0
      %692 = vmatpush.msra.mxu0 0.0
      %693 = vmatpush.msra.mxu0 0.0
      %694 = vmatpush.msra.mxu0 0.0
      %695 = vmatpush.msra.mxu0 0.0
      %696 = vmatpush.msra.mxu0 0.0
      %697 = vmatpush.msra.mxu0 0.0
      %698 = vmatpush.msra.mxu0 0.0
      %699 = vmatpush.msra.mxu0 0.0
      %700 = vmatpush.msra.mxu0 0.0
      %701 = vmatpush.msra.mxu0 %v324
      %702 = vmatpush.msra.mxu0 %v292
      %703 = vmatpush.msra.mxu0 %v260
      %704 = vmatpush.msra.mxu0 %v228
      %705 = vmatmul.f32.gmra.mxu0 %v347
      %v706 = vpop.f32.mrf.mxu0
      %v707 = vadd.f32 %v343, %v706
      %708 = vdwg.mxu0
      %709 = vmatpush.msra.mxu0 0.0
      %710 = vmatpush.msra.mxu0 0.0
      %711 = vmatpush.msra.mxu0 0.0
      %712 = vmatpush.msra.mxu0 0.0
      %713 = vmatpush.msra.mxu0 0.0
      %714 = vmatpush.msra.mxu0 0.0
      %715 = vmatpush.msra.mxu0 0.0
      %716 = vmatpush.msra.mxu0 0.0
      %717 = vmatpush.msra.mxu0 0.0
      %718 = vmatpush.msra.mxu0 0.0
      %719 = vmatpush.msra.mxu0 0.0
      %720 = vmatpush.msra.mxu0 0.0
      %721 = vmatpush.msra.mxu0 %v325
      %722 = vmatpush.msra.mxu0 %v293
      %723 = vmatpush.msra.mxu0 %v261
      %724 = vmatpush.msra.mxu0 %v229
      %725 = vmatmul.f32.gmra.mxu0 %v347
      %v726 = vpop.f32.mrf.mxu0
      %v727 = vadd.f32 %v343, %v726
      %728 = vdwg.mxu0
      %729 = vmatpush.msra.mxu0 0.0
      %730 = vmatpush.msra.mxu0 0.0
      %731 = vmatpush.msra.mxu0 0.0
      %732 = vmatpush.msra.mxu0 0.0
      %733 = vmatpush.msra.mxu0 0.0
      %734 = vmatpush.msra.mxu0 0.0
      %735 = vmatpush.msra.mxu0 0.0
      %736 = vmatpush.msra.mxu0 0.0
      %737 = vmatpush.msra.mxu0 0.0
      %738 = vmatpush.msra.mxu0 0.0
      %739 = vmatpush.msra.mxu0 0.0
      %740 = vmatpush.msra.mxu0 0.0
      %741 = vmatpush.msra.mxu0 %v326
      %742 = vmatpush.msra.mxu0 %v294
      %743 = vmatpush.msra.mxu0 %v262
      %744 = vmatpush.msra.mxu0 %v230
      %745 = vmatmul.f32.gmra.mxu0 %v347
      %v746 = vpop.f32.mrf.mxu0
      %v747 = vadd.f32 %v343, %v746
      %748 = vdwg.mxu0
      %749 = vmatpush.msra.mxu0 0.0
      %750 = vmatpush.msra.mxu0 0.0
      %751 = vmatpush.msra.mxu0 0.0
      %752 = vmatpush.msra.mxu0 0.0
      %753 = vmatpush.msra.mxu0 0.0
      %754 = vmatpush.msra.mxu0 0.0
      %755 = vmatpush.msra.mxu0 0.0
      %756 = vmatpush.msra.mxu0 0.0
      %757 = vmatpush.msra.mxu0 0.0
      %758 = vmatpush.msra.mxu0 0.0
      %759 = vmatpush.msra.mxu0 0.0
      %760 = vmatpush.msra.mxu0 0.0
      %761 = vmatpush.msra.mxu0 %v327
      %762 = vmatpush.msra.mxu0 %v295
      %763 = vmatpush.msra.mxu0 %v263
      %764 = vmatpush.msra.mxu0 %v231
      %765 = vmatmul.f32.gmra.mxu0 %v347
      %v766 = vpop.f32.mrf.mxu0
      %v767 = vadd.f32 %v343, %v766
      %768 = vdwg.mxu0
      %769 = vmatpush.msra.mxu0 0.0
      %770 = vmatpush.msra.mxu0 0.0
      %771 = vmatpush.msra.mxu0 0.0
      %772 = vmatpush.msra.mxu0 0.0
      %773 = vmatpush.msra.mxu0 0.0
      %774 = vmatpush.msra.mxu0 0.0
      %775 = vmatpush.msra.mxu0 0.0
      %776 = vmatpush.msra.mxu0 0.0
      %777 = vmatpush.msra.mxu0 0.0
      %778 = vmatpush.msra.mxu0 0.0
      %779 = vmatpush.msra.mxu0 0.0
      %780 = vmatpush.msra.mxu0 0.0
      %781 = vmatpush.msra.mxu0 %v328
      %782 = vmatpush.msra.mxu0 %v296
      %783 = vmatpush.msra.mxu0 %v264
      %784 = vmatpush.msra.mxu0 %v232
      %785 = vmatmul.f32.gmra.mxu0 %v347
      %v786 = vpop.f32.mrf.mxu0
      %v787 = vadd.f32 %v343, %v786
      %788 = vdwg.mxu0
      %789 = vmatpush.msra.mxu0 0.0
      %790 = vmatpush.msra.mxu0 0.0
      %791 = vmatpush.msra.mxu0 0.0
      %792 = vmatpush.msra.mxu0 0.0
      %793 = vmatpush.msra.mxu0 0.0
      %794 = vmatpush.msra.mxu0 0.0
      %795 = vmatpush.msra.mxu0 0.0
      %796 = vmatpush.msra.mxu0 0.0
      %797 = vmatpush.msra.mxu0 0.0
      %798 = vmatpush.msra.mxu0 0.0
      %799 = vmatpush.msra.mxu0 0.0
      %800 = vmatpush.msra.mxu0 0.0
      %801 = vmatpush.msra.mxu0 %v329
      %802 = vmatpush.msra.mxu0 %v297
      %803 = vmatpush.msra.mxu0 %v265
      %804 = vmatpush.msra.mxu0 %v233
      %805 = vmatmul.f32.gmra.mxu0 %v347
      %v806 = vpop.f32.mrf.mxu0
      %v807 = vadd.f32 %v343, %v806
      %808 = vdwg.mxu0
      %809 = vmatpush.msra.mxu0 0.0
      %810 = vmatpush.msra.mxu0 0.0
      %811 = vmatpush.msra.mxu0 0.0
      %812 = vmatpush.msra.mxu0 0.0
      %813 = vmatpush.msra.mxu0 0.0
      %814 = vmatpush.msra.mxu0 0.0
      %815 = vmatpush.msra.mxu0 0.0
      %816 = vmatpush.msra.mxu0 0.0
      %817 = vmatpush.msra.mxu0 0.0
      %818 = vmatpush.msra.mxu0 0.0
      %819 = vmatpush.msra.mxu0 0.0
      %820 = vmatpush.msra.mxu0 0.0
      %821 = vmatpush.msra.mxu0 %v330
      %822 = vmatpush.msra.mxu0 %v298
      %823 = vmatpush.msra.mxu0 %v266
      %824 = vmatpush.msra.mxu0 %v234
      %825 = vmatmul.f32.gmra.mxu0 %v347
      %v826 = vpop.f32.mrf.mxu0
      %v827 = vadd.f32 %v343, %v826
      %828 = vdwg.mxu0
      %829 = vmatpush.msra.mxu0 0.0
      %830 = vmatpush.msra.mxu0 0.0
      %831 = vmatpush.msra.mxu0 0.0
      %832 = vmatpush.msra.mxu0 0.0
      %833 = vmatpush.msra.mxu0 0.0
      %834 = vmatpush.msra.mxu0 0.0
      %835 = vmatpush.msra.mxu0 0.0
      %836 = vmatpush.msra.mxu0 0.0
      %837 = vmatpush.msra.mxu0 0.0
      %838 = vmatpush.msra.mxu0 0.0
      %839 = vmatpush.msra.mxu0 0.0
      %840 = vmatpush.msra.mxu0 0.0
      %841 = vmatpush.msra.mxu0 %v331
      %842 = vmatpush.msra.mxu0 %v299
      %843 = vmatpush.msra.mxu0 %v267
      %844 = vmatpush.msra.mxu0 %v235
      %845 = vmatmul.f32.gmra.mxu0 %v347
      %v846 = vpop.f32.mrf.mxu0
      %v847 = vadd.f32 %v343, %v846
      %848 = vdwg.mxu0
      %849 = vmatpush.msra.mxu0 0.0
      %850 = vmatpush.msra.mxu0 0.0
      %851 = vmatpush.msra.mxu0 0.0
      %852 = vmatpush.msra.mxu0 0.0
      %853 = vmatpush.msra.mxu0 0.0
      %854 = vmatpush.msra.mxu0 0.0
      %855 = vmatpush.msra.mxu0 0.0
      %856 = vmatpush.msra.mxu0 0.0
      %857 = vmatpush.msra.mxu0 0.0
      %858 = vmatpush.msra.mxu0 0.0
      %859 = vmatpush.msra.mxu0 0.0
      %860 = vmatpush.msra.mxu0 0.0
      %861 = vmatpush.msra.mxu0 %v332
      %862 = vmatpush.msra.mxu0 %v300
      %863 = vmatpush.msra.mxu0 %v268
      %864 = vmatpush.msra.mxu0 %v236
      %865 = vmatmul.f32.gmra.mxu0 %v347
      %v866 = vpop.f32.mrf.mxu0
      %v867 = vadd.f32 %v343, %v866
      %868 = vdwg.mxu0
      %869 = vmatpush.msra.mxu0 0.0
      %870 = vmatpush.msra.mxu0 0.0
      %871 = vmatpush.msra.mxu0 0.0
      %872 = vmatpush.msra.mxu0 0.0
      %873 = vmatpush.msra.mxu0 0.0
      %874 = vmatpush.msra.mxu0 0.0
      %875 = vmatpush.msra.mxu0 0.0
      %876 = vmatpush.msra.mxu0 0.0
      %877 = vmatpush.msra.mxu0 0.0
      %878 = vmatpush.msra.mxu0 0.0
      %879 = vmatpush.msra.mxu0 0.0
      %880 = vmatpush.msra.mxu0 0.0
      %881 = vmatpush.msra.mxu0 %v333
      %882 = vmatpush.msra.mxu0 %v301
      %883 = vmatpush.msra.mxu0 %v269
      %884 = vmatpush.msra.mxu0 %v237
      %885 = vmatmul.f32.gmra.mxu0 %v347
      %v886 = vpop.f32.mrf.mxu0
      %v887 = vadd.f32 %v343, %v886
      %888 = vdwg.mxu0
      %889 = vmatpush.msra.mxu0 0.0
      %890 = vmatpush.msra.mxu0 0.0
      %891 = vmatpush.msra.mxu0 0.0
      %892 = vmatpush.msra.mxu0 0.0
      %893 = vmatpush.msra.mxu0 0.0
      %894 = vmatpush.msra.mxu0 0.0
      %895 = vmatpush.msra.mxu0 0.0
      %896 = vmatpush.msra.mxu0 0.0
      %897 = vmatpush.msra.mxu0 0.0
      %898 = vmatpush.msra.mxu0 0.0
      %899 = vmatpush.msra.mxu0 0.0
      %900 = vmatpush.msra.mxu0 0.0
      %901 = vmatpush.msra.mxu0 %v334
      %902 = vmatpush.msra.mxu0 %v302
      %903 = vmatpush.msra.mxu0 %v270
      %904 = vmatpush.msra.mxu0 %v238
      %905 = vmatmul.f32.gmra.mxu0 %v347
      %v906 = vpop.f32.mrf.mxu0
      %v907 = vadd.f32 %v343, %v906
      %908 = vdwg.mxu0
      %909 = vmatpush.msra.mxu0 0.0
      %910 = vmatpush.msra.mxu0 0.0
      %911 = vmatpush.msra.mxu0 0.0
      %912 = vmatpush.msra.mxu0 0.0
      %913 = vmatpush.msra.mxu0 0.0
      %914 = vmatpush.msra.mxu0 0.0
      %915 = vmatpush.msra.mxu0 0.0
      %916 = vmatpush.msra.mxu0 0.0
      %917 = vmatpush.msra.mxu0 0.0
      %918 = vmatpush.msra.mxu0 0.0
      %919 = vmatpush.msra.mxu0 0.0
      %920 = vmatpush.msra.mxu0 0.0
      %921 = vmatpush.msra.mxu0 %v335
      %922 = vmatpush.msra.mxu0 %v303
      %923 = vmatpush.msra.mxu0 %v271
      %924 = vmatpush.msra.mxu0 %v239
      %925 = vmatmul.f32.gmra.mxu0 %v347
      %v926 = vpop.f32.mrf.mxu0
      %v927 = vadd.f32 %v343, %v926
      %928 = vdwg.mxu0
      %929 = vmatpush.msra.mxu0 0.0
      %930 = vmatpush.msra.mxu0 0.0
      %931 = vmatpush.msra.mxu0 0.0
      %932 = vmatpush.msra.mxu0 0.0
      %933 = vmatpush.msra.mxu0 0.0
      %934 = vmatpush.msra.mxu0 0.0
      %935 = vmatpush.msra.mxu0 0.0
      %936 = vmatpush.msra.mxu0 0.0
      %937 = vmatpush.msra.mxu0 0.0
      %938 = vmatpush.msra.mxu0 0.0
      %939 = vmatpush.msra.mxu0 0.0
      %940 = vmatpush.msra.mxu0 0.0
      %941 = vmatpush.msra.mxu0 %v336
      %942 = vmatpush.msra.mxu0 %v304
      %943 = vmatpush.msra.mxu0 %v272
      %944 = vmatpush.msra.mxu0 %v240
      %945 = vmatmul.f32.gmra.mxu0 %v347
      %v946 = vpop.f32.mrf.mxu0
      %v947 = vadd.f32 %v343, %v946
      %948 = vdwg.mxu0
      %949 = vmatpush.msra.mxu0 0.0
      %950 = vmatpush.msra.mxu0 0.0
      %951 = vmatpush.msra.mxu0 0.0
      %952 = vmatpush.msra.mxu0 0.0
      %953 = vmatpush.msra.mxu0 0.0
      %954 = vmatpush.msra.mxu0 0.0
      %955 = vmatpush.msra.mxu0 0.0
      %956 = vmatpush.msra.mxu0 0.0
      %957 = vmatpush.msra.mxu0 0.0
      %958 = vmatpush.msra.mxu0 0.0
      %959 = vmatpush.msra.mxu0 0.0
      %960 = vmatpush.msra.mxu0 0.0
      %961 = vmatpush.msra.mxu0 %v337
      %962 = vmatpush.msra.mxu0 %v305
      %963 = vmatpush.msra.mxu0 %v273
      %964 = vmatpush.msra.mxu0 %v241
      %965 = vmatmul.f32.gmra.mxu0 %v347
      %v966 = vpop.f32.mrf.mxu0
      %v967 = vadd.f32 %v343, %v966
      %968 = vdwg.mxu0
      %969 = vmatpush.msra.mxu0 0.0
      %970 = vmatpush.msra.mxu0 0.0
      %971 = vmatpush.msra.mxu0 0.0
      %972 = vmatpush.msra.mxu0 0.0
      %973 = vmatpush.msra.mxu0 0.0
      %974 = vmatpush.msra.mxu0 0.0
      %975 = vmatpush.msra.mxu0 0.0
      %976 = vmatpush.msra.mxu0 0.0
      %977 = vmatpush.msra.mxu0 0.0
      %978 = vmatpush.msra.mxu0 0.0
      %979 = vmatpush.msra.mxu0 0.0
      %980 = vmatpush.msra.mxu0 0.0
      %981 = vmatpush.msra.mxu0 %v338
      %982 = vmatpush.msra.mxu0 %v306
      %983 = vmatpush.msra.mxu0 %v274
      %984 = vmatpush.msra.mxu0 %v242
      %985 = vmatmul.f32.gmra.mxu0 %v347
      %v986 = vpop.f32.mrf.mxu0
      %v987 = vadd.f32 %v343, %v986
      %988 = vdwg.mxu0
      %v989 = vxor.u32 %v367, 2147483648
      %v990 = vxor.u32 %v387, 2147483648
      %v991 = vxor.u32 %v407, 2147483648
      %v992 = vxor.u32 %v427, 2147483648
      %v993 = vxor.u32 %v447, 2147483648
      %v994 = vxor.u32 %v467, 2147483648
      %v995 = vxor.u32 %v487, 2147483648
      %v996 = vxor.u32 %v507, 2147483648
      %v997 = vxor.u32 %v527, 2147483648
      %v998 = vxor.u32 %v547, 2147483648
      %v999 = vxor.u32 %v567, 2147483648
      %v1000 = vxor.u32 %v587, 2147483648
      %v1001 = vxor.u32 %v607, 2147483648
      %v1002 = vxor.u32 %v627, 2147483648
      %v1003 = vxor.u32 %v647, 2147483648
      %v1004 = vxor.u32 %v667, 2147483648
      %v1005 = vxor.u32 %v687, 2147483648
      %v1006 = vxor.u32 %v707, 2147483648
      %v1007 = vxor.u32 %v727, 2147483648
      %v1008 = vxor.u32 %v747, 2147483648
      %v1009 = vxor.u32 %v767, 2147483648
      %v1010 = vxor.u32 %v787, 2147483648
      %v1011 = vxor.u32 %v807, 2147483648
      %v1012 = vxor.u32 %v827, 2147483648
      %v1013 = vxor.u32 %v847, 2147483648
      %v1014 = vxor.u32 %v867, 2147483648
      %v1015 = vxor.u32 %v887, 2147483648
      %v1016 = vxor.u32 %v907, 2147483648
      %v1017 = vxor.u32 %v927, 2147483648
      %v1018 = vxor.u32 %v947, 2147483648
      %v1019 = vxor.u32 %v967, 2147483648
      %v1020 = vxor.u32 %v987, 2147483648
      %v1021 = vmul.f32 %v989, 1.442695
      %v1022 = vpow.pop %v1021
      %v1023 = vmul.f32 %v990, 1.442695
      %v1024 = vpow.pop %v1023
      %v1025 = vmul.f32 %v991, 1.442695
      %v1026 = vpow.pop %v1025
      %v1027 = vmul.f32 %v992, 1.442695
      %v1028 = vpow.pop %v1027
      %v1029 = vmul.f32 %v993, 1.442695
      %v1030 = vpow.pop %v1029
      %v1031 = vmul.f32 %v994, 1.442695
      %v1032 = vpow.pop %v1031
      %v1033 = vmul.f32 %v995, 1.442695
      %v1034 = vpow.pop %v1033
      %v1035 = vmul.f32 %v996, 1.442695
      %v1036 = vpow.pop %v1035
      %v1037 = vmul.f32 %v997, 1.442695
      %v1038 = vpow.pop %v1037
      %v1039 = vmul.f32 %v998, 1.442695
      %v1040 = vpow.pop %v1039
      %v1041 = vmul.f32 %v999, 1.442695
      %v1042 = vpow.pop %v1041
      %v1043 = vmul.f32 %v1000, 1.442695
      %v1044 = vpow.pop %v1043
      %v1045 = vmul.f32 %v1001, 1.442695
      %v1046 = vpow.pop %v1045
      %v1047 = vmul.f32 %v1002, 1.442695
      %v1048 = vpow.pop %v1047
      %v1049 = vmul.f32 %v1003, 1.442695
      %v1050 = vpow.pop %v1049
      %v1051 = vmul.f32 %v1004, 1.442695
      %v1052 = vpow.pop %v1051
      %v1053 = vmul.f32 %v1005, 1.442695
      %v1054 = vpow.pop %v1053
      %v1055 = vmul.f32 %v1006, 1.442695
      %v1056 = vpow.pop %v1055
      %v1057 = vmul.f32 %v1007, 1.442695
      %v1058 = vpow.pop %v1057
      %v1059 = vmul.f32 %v1008, 1.442695
      %v1060 = vpow.pop %v1059
      %v1061 = vmul.f32 %v1009, 1.442695
      %v1062 = vpow.pop %v1061
      %v1063 = vmul.f32 %v1010, 1.442695
      %v1064 = vpow.pop %v1063
      %v1065 = vmul.f32 %v1011, 1.442695
      %v1066 = vpow.pop %v1065
      %v1067 = vmul.f32 %v1012, 1.442695
      %v1068 = vpow.pop %v1067
      %v1069 = vmul.f32 %v1013, 1.442695
      %v1070 = vpow.pop %v1069
      %v1071 = vmul.f32 %v1014, 1.442695
      %v1072 = vpow.pop %v1071
      %v1073 = vmul.f32 %v1015, 1.442695
      %v1074 = vpow.pop %v1073
      %v1075 = vmul.f32 %v1016, 1.442695
      %v1076 = vpow.pop %v1075
      %v1077 = vmul.f32 %v1017, 1.442695
      %v1078 = vpow.pop %v1077
      %v1079 = vmul.f32 %v1018, 1.442695
      %v1080 = vpow.pop %v1079
      %v1081 = vmul.f32 %v1019, 1.442695
      %v1082 = vpow.pop %v1081
      %v1083 = vmul.f32 %v1020, 1.442695
      %v1084 = vpow.pop %v1083
      %v1085 = vadd.f32 %v1022, 1.0
      %v1086 = vadd.f32 %v1024, 1.0
      %v1087 = vadd.f32 %v1026, 1.0
      %v1088 = vadd.f32 %v1028, 1.0
      %v1089 = vadd.f32 %v1030, 1.0
      %v1090 = vadd.f32 %v1032, 1.0
      %v1091 = vadd.f32 %v1034, 1.0
      %v1092 = vadd.f32 %v1036, 1.0
      %v1093 = vadd.f32 %v1038, 1.0
      %v1094 = vadd.f32 %v1040, 1.0
      %v1095 = vadd.f32 %v1042, 1.0
      %v1096 = vadd.f32 %v1044, 1.0
      %v1097 = vadd.f32 %v1046, 1.0
      %v1098 = vadd.f32 %v1048, 1.0
      %v1099 = vadd.f32 %v1050, 1.0
      %v1100 = vadd.f32 %v1052, 1.0
      %v1101 = vadd.f32 %v1054, 1.0
      %v1102 = vadd.f32 %v1056, 1.0
      %v1103 = vadd.f32 %v1058, 1.0
      %v1104 = vadd.f32 %v1060, 1.0
      %v1105 = vadd.f32 %v1062, 1.0
      %v1106 = vadd.f32 %v1064, 1.0
      %v1107 = vadd.f32 %v1066, 1.0
      %v1108 = vadd.f32 %v1068, 1.0
      %v1109 = vadd.f32 %v1070, 1.0
      %v1110 = vadd.f32 %v1072, 1.0
      %v1111 = vadd.f32 %v1074, 1.0
      %v1112 = vadd.f32 %v1076, 1.0
      %v1113 = vadd.f32 %v1078, 1.0
      %v1114 = vadd.f32 %v1080, 1.0
      %v1115 = vadd.f32 %v1082, 1.0
      %v1116 = vadd.f32 %v1084, 1.0
      %v1117 = vrcp.pop %v1085
      %v1118 = vmul.f32 %v1085, %v1117
      %v1119 = vsub.f32 1.0, %v1118
      %v1120 = vmul.f32 %v1117, %v1119
      %v1121 = vadd.f32 %v1117, %v1120
      %vm1122 = vweird.f32 %v1085
      %vm1123 = vweird.f32 %v1117
      %vm1124 = vmor %vm1122, %vm1123
      %v1125 = vsel %vm1124, %v1117, %v1121
      %v1126 = vand.u32 2147483647, %v1085
      %vm1127 = vcmp.eq.f32.partialorder %v1126, 8.507059e+37
      %v1128 = vand.u32 %v1085, 2147483648
      %v1129 = vor.u32 1.1754944e-38, %v1128
      %v1130 = vsel %vm1127, %v1129, %v1125
      %v1131 = vmul.f32 1.0, %v1130
      %v1132 = vrcp.pop %v1086
      %v1133 = vmul.f32 %v1086, %v1132
      %v1134 = vsub.f32 1.0, %v1133
      %v1135 = vmul.f32 %v1132, %v1134
      %v1136 = vadd.f32 %v1132, %v1135
      %vm1137 = vweird.f32 %v1086
      %vm1138 = vweird.f32 %v1132
      %vm1139 = vmor %vm1137, %vm1138
      %v1140 = vsel %vm1139, %v1132, %v1136
      %v1141 = vand.u32 2147483647, %v1086
      %vm1142 = vcmp.eq.f32.partialorder %v1141, 8.507059e+37
      %v1143 = vand.u32 %v1086, 2147483648
      %v1144 = vor.u32 1.1754944e-38, %v1143
      %v1145 = vsel %vm1142, %v1144, %v1140
      %v1146 = vmul.f32 1.0, %v1145
      %v1147 = vrcp.pop %v1087
      %v1148 = vmul.f32 %v1087, %v1147
      %v1149 = vsub.f32 1.0, %v1148
      %v1150 = vmul.f32 %v1147, %v1149
      %v1151 = vadd.f32 %v1147, %v1150
      %vm1152 = vweird.f32 %v1087
      %vm1153 = vweird.f32 %v1147
      %vm1154 = vmor %vm1152, %vm1153
      %v1155 = vsel %vm1154, %v1147, %v1151
      %v1156 = vand.u32 2147483647, %v1087
      %vm1157 = vcmp.eq.f32.partialorder %v1156, 8.507059e+37
      %v1158 = vand.u32 %v1087, 2147483648
      %v1159 = vor.u32 1.1754944e-38, %v1158
      %v1160 = vsel %vm1157, %v1159, %v1155
      %v1161 = vmul.f32 1.0, %v1160
      %v1162 = vrcp.pop %v1088
      %v1163 = vmul.f32 %v1088, %v1162
      %v1164 = vsub.f32 1.0, %v1163
      %v1165 = vmul.f32 %v1162, %v1164
      %v1166 = vadd.f32 %v1162, %v1165
      %vm1167 = vweird.f32 %v1088
      %vm1168 = vweird.f32 %v1162
      %vm1169 = vmor %vm1167, %vm1168
      %v1170 = vsel %vm1169, %v1162, %v1166
      %v1171 = vand.u32 2147483647, %v1088
      %vm1172 = vcmp.eq.f32.partialorder %v1171, 8.507059e+37
      %v1173 = vand.u32 %v1088, 2147483648
      %v1174 = vor.u32 1.1754944e-38, %v1173
      %v1175 = vsel %vm1172, %v1174, %v1170
      %v1176 = vmul.f32 1.0, %v1175
      %v1177 = vrcp.pop %v1089
      %v1178 = vmul.f32 %v1089, %v1177
      %v1179 = vsub.f32 1.0, %v1178
      %v1180 = vmul.f32 %v1177, %v1179
      %v1181 = vadd.f32 %v1177, %v1180
      %vm1182 = vweird.f32 %v1089
      %vm1183 = vweird.f32 %v1177
      %vm1184 = vmor %vm1182, %vm1183
      %v1185 = vsel %vm1184, %v1177, %v1181
      %v1186 = vand.u32 2147483647, %v1089
      %vm1187 = vcmp.eq.f32.partialorder %v1186, 8.507059e+37
      %v1188 = vand.u32 %v1089, 2147483648
      %v1189 = vor.u32 1.1754944e-38, %v1188
      %v1190 = vsel %vm1187, %v1189, %v1185
      %v1191 = vmul.f32 1.0, %v1190
      %v1192 = vrcp.pop %v1090
      %v1193 = vmul.f32 %v1090, %v1192
      %v1194 = vsub.f32 1.0, %v1193
      %v1195 = vmul.f32 %v1192, %v1194
      %v1196 = vadd.f32 %v1192, %v1195
      %vm1197 = vweird.f32 %v1090
      %vm1198 = vweird.f32 %v1192
      %vm1199 = vmor %vm1197, %vm1198
      %v1200 = vsel %vm1199, %v1192, %v1196
      %v1201 = vand.u32 2147483647, %v1090
      %vm1202 = vcmp.eq.f32.partialorder %v1201, 8.507059e+37
      %v1203 = vand.u32 %v1090, 2147483648
      %v1204 = vor.u32 1.1754944e-38, %v1203
      %v1205 = vsel %vm1202, %v1204, %v1200
      %v1206 = vmul.f32 1.0, %v1205
      %v1207 = vrcp.pop %v1091
      %v1208 = vmul.f32 %v1091, %v1207
      %v1209 = vsub.f32 1.0, %v1208
      %v1210 = vmul.f32 %v1207, %v1209
      %v1211 = vadd.f32 %v1207, %v1210
      %vm1212 = vweird.f32 %v1091
      %vm1213 = vweird.f32 %v1207
      %vm1214 = vmor %vm1212, %vm1213
      %v1215 = vsel %vm1214, %v1207, %v1211
      %v1216 = vand.u32 2147483647, %v1091
      %vm1217 = vcmp.eq.f32.partialorder %v1216, 8.507059e+37
      %v1218 = vand.u32 %v1091, 2147483648
      %v1219 = vor.u32 1.1754944e-38, %v1218
      %v1220 = vsel %vm1217, %v1219, %v1215
      %v1221 = vmul.f32 1.0, %v1220
      %v1222 = vrcp.pop %v1092
      %v1223 = vmul.f32 %v1092, %v1222
      %v1224 = vsub.f32 1.0, %v1223
      %v1225 = vmul.f32 %v1222, %v1224
      %v1226 = vadd.f32 %v1222, %v1225
      %vm1227 = vweird.f32 %v1092
      %vm1228 = vweird.f32 %v1222
      %vm1229 = vmor %vm1227, %vm1228
      %v1230 = vsel %vm1229, %v1222, %v1226
      %v1231 = vand.u32 2147483647, %v1092
      %vm1232 = vcmp.eq.f32.partialorder %v1231, 8.507059e+37
      %v1233 = vand.u32 %v1092, 2147483648
      %v1234 = vor.u32 1.1754944e-38, %v1233
      %v1235 = vsel %vm1232, %v1234, %v1230
      %v1236 = vmul.f32 1.0, %v1235
      %v1237 = vrcp.pop %v1093
      %v1238 = vmul.f32 %v1093, %v1237
      %v1239 = vsub.f32 1.0, %v1238
      %v1240 = vmul.f32 %v1237, %v1239
      %v1241 = vadd.f32 %v1237, %v1240
      %vm1242 = vweird.f32 %v1093
      %vm1243 = vweird.f32 %v1237
      %vm1244 = vmor %vm1242, %vm1243
      %v1245 = vsel %vm1244, %v1237, %v1241
      %v1246 = vand.u32 2147483647, %v1093
      %vm1247 = vcmp.eq.f32.partialorder %v1246, 8.507059e+37
      %v1248 = vand.u32 %v1093, 2147483648
      %v1249 = vor.u32 1.1754944e-38, %v1248
      %v1250 = vsel %vm1247, %v1249, %v1245
      %v1251 = vmul.f32 1.0, %v1250
      %v1252 = vrcp.pop %v1094
      %v1253 = vmul.f32 %v1094, %v1252
      %v1254 = vsub.f32 1.0, %v1253
      %v1255 = vmul.f32 %v1252, %v1254
      %v1256 = vadd.f32 %v1252, %v1255
      %vm1257 = vweird.f32 %v1094
      %vm1258 = vweird.f32 %v1252
      %vm1259 = vmor %vm1257, %vm1258
      %v1260 = vsel %vm1259, %v1252, %v1256
      %v1261 = vand.u32 2147483647, %v1094
      %vm1262 = vcmp.eq.f32.partialorder %v1261, 8.507059e+37
      %v1263 = vand.u32 %v1094, 2147483648
      %v1264 = vor.u32 1.1754944e-38, %v1263
      %v1265 = vsel %vm1262, %v1264, %v1260
      %v1266 = vmul.f32 1.0, %v1265
      %v1267 = vrcp.pop %v1095
      %v1268 = vmul.f32 %v1095, %v1267
      %v1269 = vsub.f32 1.0, %v1268
      %v1270 = vmul.f32 %v1267, %v1269
      %v1271 = vadd.f32 %v1267, %v1270
      %vm1272 = vweird.f32 %v1095
      %vm1273 = vweird.f32 %v1267
      %vm1274 = vmor %vm1272, %vm1273
      %v1275 = vsel %vm1274, %v1267, %v1271
      %v1276 = vand.u32 2147483647, %v1095
      %vm1277 = vcmp.eq.f32.partialorder %v1276, 8.507059e+37
      %v1278 = vand.u32 %v1095, 2147483648
      %v1279 = vor.u32 1.1754944e-38, %v1278
      %v1280 = vsel %vm1277, %v1279, %v1275
      %v1281 = vmul.f32 1.0, %v1280
      %v1282 = vrcp.pop %v1096
      %v1283 = vmul.f32 %v1096, %v1282
      %v1284 = vsub.f32 1.0, %v1283
      %v1285 = vmul.f32 %v1282, %v1284
      %v1286 = vadd.f32 %v1282, %v1285
      %vm1287 = vweird.f32 %v1096
      %vm1288 = vweird.f32 %v1282
      %vm1289 = vmor %vm1287, %vm1288
      %v1290 = vsel %vm1289, %v1282, %v1286
      %v1291 = vand.u32 2147483647, %v1096
      %vm1292 = vcmp.eq.f32.partialorder %v1291, 8.507059e+37
      %v1293 = vand.u32 %v1096, 2147483648
      %v1294 = vor.u32 1.1754944e-38, %v1293
      %v1295 = vsel %vm1292, %v1294, %v1290
      %v1296 = vmul.f32 1.0, %v1295
      %v1297 = vrcp.pop %v1097
      %v1298 = vmul.f32 %v1097, %v1297
      %v1299 = vsub.f32 1.0, %v1298
      %v1300 = vmul.f32 %v1297, %v1299
      %v1301 = vadd.f32 %v1297, %v1300
      %vm1302 = vweird.f32 %v1097
      %vm1303 = vweird.f32 %v1297
      %vm1304 = vmor %vm1302, %vm1303
      %v1305 = vsel %vm1304, %v1297, %v1301
      %v1306 = vand.u32 2147483647, %v1097
      %vm1307 = vcmp.eq.f32.partialorder %v1306, 8.507059e+37
      %v1308 = vand.u32 %v1097, 2147483648
      %v1309 = vor.u32 1.1754944e-38, %v1308
      %v1310 = vsel %vm1307, %v1309, %v1305
      %v1311 = vmul.f32 1.0, %v1310
      %v1312 = vrcp.pop %v1098
      %v1313 = vmul.f32 %v1098, %v1312
      %v1314 = vsub.f32 1.0, %v1313
      %v1315 = vmul.f32 %v1312, %v1314
      %v1316 = vadd.f32 %v1312, %v1315
      %vm1317 = vweird.f32 %v1098
      %vm1318 = vweird.f32 %v1312
      %vm1319 = vmor %vm1317, %vm1318
      %v1320 = vsel %vm1319, %v1312, %v1316
      %v1321 = vand.u32 2147483647, %v1098
      %vm1322 = vcmp.eq.f32.partialorder %v1321, 8.507059e+37
      %v1323 = vand.u32 %v1098, 2147483648
      %v1324 = vor.u32 1.1754944e-38, %v1323
      %v1325 = vsel %vm1322, %v1324, %v1320
      %v1326 = vmul.f32 1.0, %v1325
      %v1327 = vrcp.pop %v1099
      %v1328 = vmul.f32 %v1099, %v1327
      %v1329 = vsub.f32 1.0, %v1328
      %v1330 = vmul.f32 %v1327, %v1329
      %v1331 = vadd.f32 %v1327, %v1330
      %vm1332 = vweird.f32 %v1099
      %vm1333 = vweird.f32 %v1327
      %vm1334 = vmor %vm1332, %vm1333
      %v1335 = vsel %vm1334, %v1327, %v1331
      %v1336 = vand.u32 2147483647, %v1099
      %vm1337 = vcmp.eq.f32.partialorder %v1336, 8.507059e+37
      %v1338 = vand.u32 %v1099, 2147483648
      %v1339 = vor.u32 1.1754944e-38, %v1338
      %v1340 = vsel %vm1337, %v1339, %v1335
      %v1341 = vmul.f32 1.0, %v1340
      %v1342 = vrcp.pop %v1100
      %v1343 = vmul.f32 %v1100, %v1342
      %v1344 = vsub.f32 1.0, %v1343
      %v1345 = vmul.f32 %v1342, %v1344
      %v1346 = vadd.f32 %v1342, %v1345
      %vm1347 = vweird.f32 %v1100
      %vm1348 = vweird.f32 %v1342
      %vm1349 = vmor %vm1347, %vm1348
      %v1350 = vsel %vm1349, %v1342, %v1346
      %v1351 = vand.u32 2147483647, %v1100
      %vm1352 = vcmp.eq.f32.partialorder %v1351, 8.507059e+37
      %v1353 = vand.u32 %v1100, 2147483648
      %v1354 = vor.u32 1.1754944e-38, %v1353
      %v1355 = vsel %vm1352, %v1354, %v1350
      %v1356 = vmul.f32 1.0, %v1355
      %v1357 = vrcp.pop %v1101
      %v1358 = vmul.f32 %v1101, %v1357
      %v1359 = vsub.f32 1.0, %v1358
      %v1360 = vmul.f32 %v1357, %v1359
      %v1361 = vadd.f32 %v1357, %v1360
      %vm1362 = vweird.f32 %v1101
      %vm1363 = vweird.f32 %v1357
      %vm1364 = vmor %vm1362, %vm1363
      %v1365 = vsel %vm1364, %v1357, %v1361
      %v1366 = vand.u32 2147483647, %v1101
      %vm1367 = vcmp.eq.f32.partialorder %v1366, 8.507059e+37
      %v1368 = vand.u32 %v1101, 2147483648
      %v1369 = vor.u32 1.1754944e-38, %v1368
      %v1370 = vsel %vm1367, %v1369, %v1365
      %v1371 = vmul.f32 1.0, %v1370
      %v1372 = vrcp.pop %v1102
      %v1373 = vmul.f32 %v1102, %v1372
      %v1374 = vsub.f32 1.0, %v1373
      %v1375 = vmul.f32 %v1372, %v1374
      %v1376 = vadd.f32 %v1372, %v1375
      %vm1377 = vweird.f32 %v1102
      %vm1378 = vweird.f32 %v1372
      %vm1379 = vmor %vm1377, %vm1378
      %v1380 = vsel %vm1379, %v1372, %v1376
      %v1381 = vand.u32 2147483647, %v1102
      %vm1382 = vcmp.eq.f32.partialorder %v1381, 8.507059e+37
      %v1383 = vand.u32 %v1102, 2147483648
      %v1384 = vor.u32 1.1754944e-38, %v1383
      %v1385 = vsel %vm1382, %v1384, %v1380
      %v1386 = vmul.f32 1.0, %v1385
      %v1387 = vrcp.pop %v1103
      %v1388 = vmul.f32 %v1103, %v1387
      %v1389 = vsub.f32 1.0, %v1388
      %v1390 = vmul.f32 %v1387, %v1389
      %v1391 = vadd.f32 %v1387, %v1390
      %vm1392 = vweird.f32 %v1103
      %vm1393 = vweird.f32 %v1387
      %vm1394 = vmor %vm1392, %vm1393
      %v1395 = vsel %vm1394, %v1387, %v1391
      %v1396 = vand.u32 2147483647, %v1103
      %vm1397 = vcmp.eq.f32.partialorder %v1396, 8.507059e+37
      %v1398 = vand.u32 %v1103, 2147483648
      %v1399 = vor.u32 1.1754944e-38, %v1398
      %v1400 = vsel %vm1397, %v1399, %v1395
      %v1401 = vmul.f32 1.0, %v1400
      %v1402 = vrcp.pop %v1104
      %v1403 = vmul.f32 %v1104, %v1402
      %v1404 = vsub.f32 1.0, %v1403
      %v1405 = vmul.f32 %v1402, %v1404
      %v1406 = vadd.f32 %v1402, %v1405
      %vm1407 = vweird.f32 %v1104
      %vm1408 = vweird.f32 %v1402
      %vm1409 = vmor %vm1407, %vm1408
      %v1410 = vsel %vm1409, %v1402, %v1406
      %v1411 = vand.u32 2147483647, %v1104
      %vm1412 = vcmp.eq.f32.partialorder %v1411, 8.507059e+37
      %v1413 = vand.u32 %v1104, 2147483648
      %v1414 = vor.u32 1.1754944e-38, %v1413
      %v1415 = vsel %vm1412, %v1414, %v1410
      %v1416 = vmul.f32 1.0, %v1415
      %v1417 = vrcp.pop %v1105
      %v1418 = vmul.f32 %v1105, %v1417
      %v1419 = vsub.f32 1.0, %v1418
      %v1420 = vmul.f32 %v1417, %v1419
      %v1421 = vadd.f32 %v1417, %v1420
      %vm1422 = vweird.f32 %v1105
      %vm1423 = vweird.f32 %v1417
      %vm1424 = vmor %vm1422, %vm1423
      %v1425 = vsel %vm1424, %v1417, %v1421
      %v1426 = vand.u32 2147483647, %v1105
      %vm1427 = vcmp.eq.f32.partialorder %v1426, 8.507059e+37
      %v1428 = vand.u32 %v1105, 2147483648
      %v1429 = vor.u32 1.1754944e-38, %v1428
      %v1430 = vsel %vm1427, %v1429, %v1425
      %v1431 = vmul.f32 1.0, %v1430
      %v1432 = vrcp.pop %v1106
      %v1433 = vmul.f32 %v1106, %v1432
      %v1434 = vsub.f32 1.0, %v1433
      %v1435 = vmul.f32 %v1432, %v1434
      %v1436 = vadd.f32 %v1432, %v1435
      %vm1437 = vweird.f32 %v1106
      %vm1438 = vweird.f32 %v1432
      %vm1439 = vmor %vm1437, %vm1438
      %v1440 = vsel %vm1439, %v1432, %v1436
      %v1441 = vand.u32 2147483647, %v1106
      %vm1442 = vcmp.eq.f32.partialorder %v1441, 8.507059e+37
      %v1443 = vand.u32 %v1106, 2147483648
      %v1444 = vor.u32 1.1754944e-38, %v1443
      %v1445 = vsel %vm1442, %v1444, %v1440
      %v1446 = vmul.f32 1.0, %v1445
      %v1447 = vrcp.pop %v1107
      %v1448 = vmul.f32 %v1107, %v1447
      %v1449 = vsub.f32 1.0, %v1448
      %v1450 = vmul.f32 %v1447, %v1449
      %v1451 = vadd.f32 %v1447, %v1450
      %vm1452 = vweird.f32 %v1107
      %vm1453 = vweird.f32 %v1447
      %vm1454 = vmor %vm1452, %vm1453
      %v1455 = vsel %vm1454, %v1447, %v1451
      %v1456 = vand.u32 2147483647, %v1107
      %vm1457 = vcmp.eq.f32.partialorder %v1456, 8.507059e+37
      %v1458 = vand.u32 %v1107, 2147483648
      %v1459 = vor.u32 1.1754944e-38, %v1458
      %v1460 = vsel %vm1457, %v1459, %v1455
      %v1461 = vmul.f32 1.0, %v1460
      %v1462 = vrcp.pop %v1108
      %v1463 = vmul.f32 %v1108, %v1462
      %v1464 = vsub.f32 1.0, %v1463
      %v1465 = vmul.f32 %v1462, %v1464
      %v1466 = vadd.f32 %v1462, %v1465
      %vm1467 = vweird.f32 %v1108
      %vm1468 = vweird.f32 %v1462
      %vm1469 = vmor %vm1467, %vm1468
      %v1470 = vsel %vm1469, %v1462, %v1466
      %v1471 = vand.u32 2147483647, %v1108
      %vm1472 = vcmp.eq.f32.partialorder %v1471, 8.507059e+37
      %v1473 = vand.u32 %v1108, 2147483648
      %v1474 = vor.u32 1.1754944e-38, %v1473
      %v1475 = vsel %vm1472, %v1474, %v1470
      %v1476 = vmul.f32 1.0, %v1475
      %v1477 = vrcp.pop %v1109
      %v1478 = vmul.f32 %v1109, %v1477
      %v1479 = vsub.f32 1.0, %v1478
      %v1480 = vmul.f32 %v1477, %v1479
      %v1481 = vadd.f32 %v1477, %v1480
      %vm1482 = vweird.f32 %v1109
      %vm1483 = vweird.f32 %v1477
      %vm1484 = vmor %vm1482, %vm1483
      %v1485 = vsel %vm1484, %v1477, %v1481
      %v1486 = vand.u32 2147483647, %v1109
      %vm1487 = vcmp.eq.f32.partialorder %v1486, 8.507059e+37
      %v1488 = vand.u32 %v1109, 2147483648
      %v1489 = vor.u32 1.1754944e-38, %v1488
      %v1490 = vsel %vm1487, %v1489, %v1485
      %v1491 = vmul.f32 1.0, %v1490
      %v1492 = vrcp.pop %v1110
      %v1493 = vmul.f32 %v1110, %v1492
      %v1494 = vsub.f32 1.0, %v1493
      %v1495 = vmul.f32 %v1492, %v1494
      %v1496 = vadd.f32 %v1492, %v1495
      %vm1497 = vweird.f32 %v1110
      %vm1498 = vweird.f32 %v1492
      %vm1499 = vmor %vm1497, %vm1498
      %v1500 = vsel %vm1499, %v1492, %v1496
      %v1501 = vand.u32 2147483647, %v1110
      %vm1502 = vcmp.eq.f32.partialorder %v1501, 8.507059e+37
      %v1503 = vand.u32 %v1110, 2147483648
      %v1504 = vor.u32 1.1754944e-38, %v1503
      %v1505 = vsel %vm1502, %v1504, %v1500
      %v1506 = vmul.f32 1.0, %v1505
      %v1507 = vrcp.pop %v1111
      %v1508 = vmul.f32 %v1111, %v1507
      %v1509 = vsub.f32 1.0, %v1508
      %v1510 = vmul.f32 %v1507, %v1509
      %v1511 = vadd.f32 %v1507, %v1510
      %vm1512 = vweird.f32 %v1111
      %vm1513 = vweird.f32 %v1507
      %vm1514 = vmor %vm1512, %vm1513
      %v1515 = vsel %vm1514, %v1507, %v1511
      %v1516 = vand.u32 2147483647, %v1111
      %vm1517 = vcmp.eq.f32.partialorder %v1516, 8.507059e+37
      %v1518 = vand.u32 %v1111, 2147483648
      %v1519 = vor.u32 1.1754944e-38, %v1518
      %v1520 = vsel %vm1517, %v1519, %v1515
      %v1521 = vmul.f32 1.0, %v1520
      %v1522 = vrcp.pop %v1112
      %v1523 = vmul.f32 %v1112, %v1522
      %v1524 = vsub.f32 1.0, %v1523
      %v1525 = vmul.f32 %v1522, %v1524
      %v1526 = vadd.f32 %v1522, %v1525
      %vm1527 = vweird.f32 %v1112
      %vm1528 = vweird.f32 %v1522
      %vm1529 = vmor %vm1527, %vm1528
      %v1530 = vsel %vm1529, %v1522, %v1526
      %v1531 = vand.u32 2147483647, %v1112
      %vm1532 = vcmp.eq.f32.partialorder %v1531, 8.507059e+37
      %v1533 = vand.u32 %v1112, 2147483648
      %v1534 = vor.u32 1.1754944e-38, %v1533
      %v1535 = vsel %vm1532, %v1534, %v1530
      %v1536 = vmul.f32 1.0, %v1535
      %v1537 = vrcp.pop %v1113
      %v1538 = vmul.f32 %v1113, %v1537
      %v1539 = vsub.f32 1.0, %v1538
      %v1540 = vmul.f32 %v1537, %v1539
      %v1541 = vadd.f32 %v1537, %v1540
      %vm1542 = vweird.f32 %v1113
      %vm1543 = vweird.f32 %v1537
      %vm1544 = vmor %vm1542, %vm1543
      %v1545 = vsel %vm1544, %v1537, %v1541
      %v1546 = vand.u32 2147483647, %v1113
      %vm1547 = vcmp.eq.f32.partialorder %v1546, 8.507059e+37
      %v1548 = vand.u32 %v1113, 2147483648
      %v1549 = vor.u32 1.1754944e-38, %v1548
      %v1550 = vsel %vm1547, %v1549, %v1545
      %v1551 = vmul.f32 1.0, %v1550
      %v1552 = vrcp.pop %v1114
      %v1553 = vmul.f32 %v1114, %v1552
      %v1554 = vsub.f32 1.0, %v1553
      %v1555 = vmul.f32 %v1552, %v1554
      %v1556 = vadd.f32 %v1552, %v1555
      %vm1557 = vweird.f32 %v1114
      %vm1558 = vweird.f32 %v1552
      %vm1559 = vmor %vm1557, %vm1558
      %v1560 = vsel %vm1559, %v1552, %v1556
      %v1561 = vand.u32 2147483647, %v1114
      %vm1562 = vcmp.eq.f32.partialorder %v1561, 8.507059e+37
      %v1563 = vand.u32 %v1114, 2147483648
      %v1564 = vor.u32 1.1754944e-38, %v1563
      %v1565 = vsel %vm1562, %v1564, %v1560
      %v1566 = vmul.f32 1.0, %v1565
      %v1567 = vrcp.pop %v1115
      %v1568 = vmul.f32 %v1115, %v1567
      %v1569 = vsub.f32 1.0, %v1568
      %v1570 = vmul.f32 %v1567, %v1569
      %v1571 = vadd.f32 %v1567, %v1570
      %vm1572 = vweird.f32 %v1115
      %vm1573 = vweird.f32 %v1567
      %vm1574 = vmor %vm1572, %vm1573
      %v1575 = vsel %vm1574, %v1567, %v1571
      %v1576 = vand.u32 2147483647, %v1115
      %vm1577 = vcmp.eq.f32.partialorder %v1576, 8.507059e+37
      %v1578 = vand.u32 %v1115, 2147483648
      %v1579 = vor.u32 1.1754944e-38, %v1578
      %v1580 = vsel %vm1577, %v1579, %v1575
      %v1581 = vmul.f32 1.0, %v1580
      %v1582 = vrcp.pop %v1116
      %v1583 = vmul.f32 %v1116, %v1582
      %v1584 = vsub.f32 1.0, %v1583
      %v1585 = vmul.f32 %v1582, %v1584
      %v1586 = vadd.f32 %v1582, %v1585
      %vm1587 = vweird.f32 %v1116
      %vm1588 = vweird.f32 %v1582
      %vm1589 = vmor %vm1587, %vm1588
      %v1590 = vsel %vm1589, %v1582, %v1586
      %v1591 = vand.u32 2147483647, %v1116
      %vm1592 = vcmp.eq.f32.partialorder %v1591, 8.507059e+37
      %v1593 = vand.u32 %v1116, 2147483648
      %v1594 = vor.u32 1.1754944e-38, %v1593
      %v1595 = vsel %vm1592, %v1594, %v1590
      %v1596 = vmul.f32 1.0, %v1595
      %1597 = vst [vmem:[%s208] sm:$0xff] %v1131
      %1598 = vst [vmem:[%s208 + $0x8] sm:$0xff] %v1146
      %1599 = vst [vmem:[%s208 + $0x10] sm:$0xff] %v1161
      %1600 = vst [vmem:[%s208 + $0x18] sm:$0xff] %v1176
      %1601 = vst [vmem:[%s208 + $0x20] sm:$0xff] %v1191
      %1602 = vst [vmem:[%s208 + $0x28] sm:$0xff] %v1206
      %1603 = vst [vmem:[%s208 + $0x30] sm:$0xff] %v1221
      %1604 = vst [vmem:[%s208 + $0x38] sm:$0xff] %v1236
      %1605 = vst [vmem:[%s208 + $0x40] sm:$0xff] %v1251
      %1606 = vst [vmem:[%s208 + $0x48] sm:$0xff] %v1266
      %1607 = vst [vmem:[%s208 + $0x50] sm:$0xff] %v1281
      %1608 = vst [vmem:[%s208 + $0x58] sm:$0xff] %v1296
      %1609 = vst [vmem:[%s208 + $0x60] sm:$0xff] %v1311
      %1610 = vst [vmem:[%s208 + $0x68] sm:$0xff] %v1326
      %1611 = vst [vmem:[%s208 + $0x70] sm:$0xff] %v1341
      %1612 = vst [vmem:[%s208 + $0x78] sm:$0xff] %v1356
      %1613 = vst [vmem:[%s208 + $0x80] sm:$0xff] %v1371
      %1614 = vst [vmem:[%s208 + $0x88] sm:$0xff] %v1386
      %1615 = vst [vmem:[%s208 + $0x90] sm:$0xff] %v1401
      %1616 = vst [vmem:[%s208 + $0x98] sm:$0xff] %v1416
      %1617 = vst [vmem:[%s208 + $0xa0] sm:$0xff] %v1431
      %1618 = vst [vmem:[%s208 + $0xa8] sm:$0xff] %v1446
      %1619 = vst [vmem:[%s208 + $0xb0] sm:$0xff] %v1461
      %1620 = vst [vmem:[%s208 + $0xb8] sm:$0xff] %v1476
      %1621 = vst [vmem:[%s208 + $0xc0] sm:$0xff] %v1491
      %1622 = vst [vmem:[%s208 + $0xc8] sm:$0xff] %v1506
      %1623 = vst [vmem:[%s208 + $0xd0] sm:$0xff] %v1521
      %1624 = vst [vmem:[%s208 + $0xd8] sm:$0xff] %v1536
      %1625 = vst [vmem:[%s208 + $0xe0] sm:$0xff] %v1551
      %1626 = vst [vmem:[%s208 + $0xe8] sm:$0xff] %v1566
      %1627 = vst [vmem:[%s208 + $0xf0] sm:$0xff] %v1581
      %1628 = vst [vmem:[%s208 + $0xf8] sm:$0xff] %v1596
      %s1629 = smul.u32 32, %s19
      %p1630 = scmp.lt.s32.totalorder %s18, 1
      %s1631 = scalar_select %p1630, %s18, 1
      %p1632 = scmp.lt.s32.totalorder %s1629, 31
      %s1633 = scalar_select %p1632, %s1629, 31
      %s1634 = smul.addr %s1631, 32
      %s1635 = sadd.s32 %s1633, %s1634
      %s1636 = smul.addr %s1635, 8
      %s1637 = scalar_lea.vmem %s3, %s1636
      // Predicated region
      $region33: #{output_transition_forward.1} parent=31 // pred_check
        %p1638 = pneg %p116
      $region34: #{output_transition_forward.1} parent=31 // pred_check_branch
        %1640 = sbr.rel (%p1638) target = $region36
      $region35: #{output_transition_forward.1} parent=31 // pred_region
        %s1641 = smul.u32 32, %s19
      $region36: #{output_transition_forward.1} parent=31 // pred_fallthru
        _
    $region32: #{output_transition_forward.1} parent=5 // pred_fallthru
      _
    %p1642 = scmp.le.s32.totalorder 2, %s9
    // Predicated region
    $region37: #{output_transition_forward.1} parent=5 // pred_check
      %p1643 = pneg %p1642
    $region38: #{output_transition_forward.1} parent=5 // pred_check_branch
      %1645 = sbr.rel (%p1643) target = $region40
    $region39: #{output_transition_forward.1} parent=5 // pred_region
      %s1646 = ssub.s32 %s9, 2
      // Predicated region
      $region41: #{output_transition_forward.1} parent=39 // pred_check
        %p1647 = pneg %p122
      $region42: #{output_transition_forward.1} parent=39 // pred_check_branch
        %1649 = sbr.rel (%p1647) target = $region44
      $region43: #{output_transition_forward.1} parent=39 // pred_region
        %s1650 = smul.u32 32, %s21
        %p1651 = scmp.lt.s32.totalorder %s20, 1
        %s1652 = scalar_select %p1651, %s20, 1
        %p1653 = scmp.lt.s32.totalorder %s1650, 31
        %s1654 = scalar_select %p1653, %s1650, 31
        %s1655 = smul.addr %s1652, 32
        %s1656 = sadd.s32 %s1654, %s1655
        %s1657 = smul.addr %s1656, 8
        %s1658 = scalar_lea.vmem %s3, %s1657
      $region44: #{output_transition_forward.1} parent=39 // pred_fallthru
        _
    $region40: #{output_transition_forward.1} parent=5 // pred_fallthru
      _
  $region6: #{output_transition_forward.1} parent=0 // loop_footer
    %s13 = sadd.s32 1, %s9
  $region7: #{output_transition_forward.1} parent=0 // loop_footer_branch
    %8 = sbr.rel target = $region3
  $region8: #{output_transition_forward.1} parent=0 // loop_exit
    _

</llo_original>
